<compile_context>
chip_gen: v7x
topology: tpu7x:2x2x1
jax: 0.10.0
libtpu: 0.0.40
codegen_flags: <defaults>
</compile_context>

<pallas_src>
import math
import numpy as np
import jax
import jax.numpy as jnp
from jax.experimental import pallas as pl
from jax.experimental.pallas import tpu as pltpu

# ----------------------------- small synthetic config -----------------------------
HIDDEN = 32            # config.hidden_size == config.blt.byte_lm.hidden_size
NUM_HEADS = 4          # config.num_attention_heads
HEAD_DIM = HIDDEN // NUM_HEADS
FFN = 64               # config.intermediate_size
VOCAB = 257            # 256 bytes + pad
PAD_ID = 256
BYTE_LM_LAYERS = 1     # config.blt.byte_lm.num_layers
LOCAL_LAYERS = 1       # config.blt.num_local_layers
LATENT_LAYERS = 1      # config.blt.num_latent_layers
MAX_PATCH_SIZE = 8     # config.blt.max_patch_size
MIN_PATCH_SIZE = 1     # config.blt.min_patch_size
ENTROPY_THRESHOLD = 10.0   # NOTE: > ln(256) -> entropy never triggers (config choice, kept from spec)
BYTE_LM_MAX_POS = 512
LATENT_MAX_POS = 64
LN_EPS = 1e-5
PATCH_BLOCK = 8        # patches per grid step in the local encoder
NEG_BIG = 1e30


def _round_up(n, m):
    return ((n + m - 1) // m) * m


# ----------------------------- shared in-kernel building blocks -----------------------------
def _layer_norm(x, g, b):
    mu = jnp.mean(x, axis=-1, keepdims=True)
    var = jnp.mean(jnp.square(x - mu), axis=-1, keepdims=True)
    return (x - mu) * jax.lax.rsqrt(var + LN_EPS) * g + b


def _encoder_layer(x2, bias, lw, l, nb, ns):
    """Pre-norm nn.TransformerEncoderLayer (packed-QKV MHA + GELU FFN), dropout = 0.

    x2:   [nb*ns, H] f32 residual stream (batch rows folded onto sublanes; ns % 8 == 0)
    bias: [nb, 1, ns] f32 additive key-padding bias (0 = attend, -1e30 = pad),
          hoisted out of the head / layer loops.
    lw:   tuple of stacked per-layer weight refs, l = static layer index
    """
    (ln1g, ln1b, wqkv, bqkv, wo, bo, ln2g, ln2b, w1, b1, w2, b2) = lw

    # ---- self-attention (pre-norm): one packed QKV matmul over all rows ----
    h = _layer_norm(x2, ln1g[l], ln1b[l])
    qkv = jnp.dot(h.astype(jnp.bfloat16), wqkv[l],
                  preferred_element_type=jnp.float32) + bqkv[l]            # [nb*ns, 3H]
    qkv3 = qkv.reshape(nb, ns, 3 * HIDDEN)                                 # leading-dim split only
    scale = 1.0 / math.sqrt(HEAD_DIM)
    attn = jnp.zeros((nb * ns, HIDDEN), jnp.float32)
    for n in range(NUM_HEADS):                                             # static unroll, batched over nb
        d0 = n * HEAD_DIM
        q = qkv3[:, :, d0:d0 + HEAD_DIM]
        k = qkv3[:, :, HIDDEN + d0:HIDDEN + d0 + HEAD_DIM]
        v = qkv3[:, :, 2 * HIDDEN + d0:2 * HIDDEN + d0 + HEAD_DIM]
        s = jnp.einsum('bqd,bkd->bqk', q.astype(jnp.bfloat16), k.astype(jnp.bfloat16),
                       preferred_element_type=jnp.float32) * scale + bias  # [nb, ns, ns]
        s = s - jnp.max(s, axis=-1, keepdims=True)
        e = jnp.exp(s)
        p = e * pl.reciprocal(jnp.sum(e, axis=-1, keepdims=True), approx=True)
        ctx = jnp.einsum('bqk,bkd->bqd', p.astype(jnp.bfloat16), v.astype(jnp.bfloat16),
                         preferred_element_type=jnp.float32)               # [nb, ns, HD]
        # fold this head straight into its slice of the output projection (no concatenate)
        attn = attn + jnp.dot(ctx.reshape(nb * ns, HEAD_DIM).astype(jnp.bfloat16),
                              wo[l, n], preferred_element_type=jnp.float32)
    x2 = x2 + attn + bo[l]

    # ---- feed-forward (pre-norm) ----
    h2 = _layer_norm(x2, ln2g[l], ln2b[l])
    ff = jnp.dot(h2.astype(jnp.bfloat16), w1[l],
                 preferred_element_type=jnp.float32) + b1[l]
    # TODO(synk): PyTorch F.gelu default is exact erf; tanh approximation used for Mosaic-safe lowering.
    ff = jax.nn.gelu(ff, approximate=True)
    ff = jnp.dot(ff.astype(jnp.bfloat16), w2[l],
                 preferred_element_type=jnp.float32) + b2[l]
    return x2 + ff


# ----------------------------- fused Pallas kernels (one per module) -----------------------------
def _byte_lm_entropy_kernel(x_ref, mrow_ref,
                            ln1g, ln1b, wqkv, bqkv, wo, bo,
                            ln2g, ln2b, w1, b1, w2, b2,
                            wproj, bproj, ent_ref):
    """SmallByteLM stack + 256-way projection + Shannon entropy; whole batch in one step."""
    lw = (ln1g, ln1b, wqkv, bqkv, wo, bo, ln2g, ln2b, w1, b1, w2, b2)
    B, S, _ = x_ref.shape
    x2 = x_ref[...].reshape(B * S, HIDDEN)                                 # [B*S, H]
    bias = (mrow_ref[...] - 1.0) * NEG_BIG                                 # hoisted additive key mask
    for l in range(BYTE_LM_LAYERS):
        x2 = _encoder_layer(x2, bias, lw, l, B, S)
    logits = jnp.dot(x2.astype(jnp.bfloat16), wproj[...],
                     preferred_element_type=jnp.float32) + bproj[...]      # [B*S, 256]
    m = jnp.max(logits, axis=-1, keepdims=True)
    z = logits - m
    e = jnp.exp(z)
    se = jnp.sum(e, axis=-1, keepdims=True)
    ez = jnp.sum(e * z, axis=-1, keepdims=True)
    # entropy = log(sum e) - sum(e*z)/sum(e); EXACT math (feeds the hard patching threshold)
    ent_ref[...] = jnp.log(se) - ez / se                                   # [B*S, 1]


def _local_encoder_kernel(x_ref, mrow_ref,
                          ln1g, ln1b, wqkv, bqkv, wo, bo,
                          ln2g, ln2b, w1, b1, w2, b2,
                          o_ref):
    """LocalEncoder stack + masked mean pooling for a block of PATCH_BLOCK patches."""
    lw = (ln1g, ln1b, wqkv, bqkv, wo, bo, ln2g, ln2b, w1, b1, w2, b2)
    PB, L, _ = x_ref.shape
    x2 = x_ref[...].reshape(PB * L, HIDDEN)
    mrow = mrow_ref[...]                                                   # [PB, 1, L]
    bias = (mrow - 1.0) * NEG_BIG
    for l in range(LOCAL_LAYERS):
        x2 = _encoder_layer(x2, bias, lw, l, PB, L)
    x3 = x2.reshape(PB, L, HIDDEN)
    summed = jnp.einsum('bol,blh->boh', mrow, x3,
                        preferred_element_type=jnp.float32)                # [PB, 1, H] masked sum
    cnt = jnp.maximum(jnp.sum(mrow, axis=-1, keepdims=True), 1e-9)         # [PB, 1, 1]
    o_ref[...] = summed / cnt


def _latent_kernel(x_ref, mrow_ref,
                   ln1g, ln1b, wqkv, bqkv, wo, bo,
                   ln2g, ln2b, w1, b1, w2, b2,
                   o_ref):
    """LatentTransformer stack; whole batch in one step."""
    # TODO(synk): TransformerBlock is undefined in the reference source; implemented as the
    # same pre-norm self-attention + GELU-FFN block used by the encoders.
    lw = (ln1g, ln1b, wqkv, bqkv, wo, bo, ln2g, ln2b, w1, b1, w2, b2)
    B, P, _ = x_ref.shape
    x2 = x_ref[...].reshape(B * P, HIDDEN)
    bias = (mrow_ref[...] - 1.0) * NEG_BIG
    for l in range(LATENT_LAYERS):
        x2 = _encoder_layer(x2, bias, lw, l, B, P)
    o_ref[...] = x2.reshape(B, P, HIDDEN).astype(o_ref.dtype)


# ----------------------------- module wrappers (JAX glue + fused kernels) -----------------------------
def _full_spec(w):
    return pl.BlockSpec(tuple(w.shape), (lambda nd: (lambda b: (0,) * nd))(w.ndim))


@jax.jit
def byte_lm_entropy(byte_ids, attention_mask, params):
    """SmallByteLM + EntropyCalculator: masked entropy per byte position [B, S]."""
    B, S = byte_ids.shape
    Sp = _round_up(S, 8)
    ids = jnp.minimum(byte_ids, 255)                      # mirrors torch.clamp(max=255)
    maskf = attention_mask.astype(jnp.float32)
    if Sp != S:
        ids = jnp.pad(ids, ((0, 0), (0, Sp - S)))
        maskp = jnp.pad(maskf, ((0, 0), (0, Sp - S)))
    else:
        maskp = maskf
    x = params['embedding'][ids] * math.sqrt(HIDDEN) + params['pe'][None, :Sp, :]
    mrow = maskp[:, None, :]                              # [B, 1, Sp] key mask (lane layout)
    ent = pl.pallas_call(
        _byte_lm_entropy_kernel,
        out_shape=jax.ShapeDtypeStruct((B * Sp, 1), jnp.float32),
    )(x, mrow, *params['layers_stacked'], params['wproj'], params['bproj'])
    # entropy mask applied here (wrapper) so the kernel carries no (B, S, 1) mask stream
    return ent.reshape(B, Sp)[:, :S] * maskf


@jax.jit
def local_encoder(patches, patch_mask, params):
    """LocalEncoder: padded patches [N, L] -> pooled embeddings [N, H]; 8 patches / grid step."""
    N, L = patches.shape
    Np = _round_up(N, PATCH_BLOCK)
    if Np != N:
        patches = jnp.pad(patches, ((0, Np - N), (0, 0)), constant_values=PAD_ID)
        patch_mask = jnp.pad(patch_mask, ((0, Np - N), (0, 0)))
    x = params['embedding'][patches] * math.sqrt(HIDDEN) + params['pe'][None, :L, :]
    mrow = patch_mask.astype(jnp.float32)[:, None, :]     # [Np, 1, L]
    in_specs = [pl.BlockSpec((PATCH_BLOCK, L, HIDDEN), lambda b: (b, 0, 0)),
                pl.BlockSpec((PATCH_BLOCK, 1, L), lambda b: (b, 0, 0))]
    in_specs += [_full_spec(w) for w in params['layers_stacked']]
    pooled = pl.pallas_call(
        _local_encoder_kernel,
        out_shape=jax.ShapeDtypeStruct((Np, 1, HIDDEN), jnp.float32),
        grid=(Np // PATCH_BLOCK,),
        in_specs=in_specs,
        out_specs=pl.BlockSpec((PATCH_BLOCK, 1, HIDDEN), lambda b: (b, 0, 0)),
        # TODO(synk): on v7x switch to pltpu.CORE_PARALLEL once patch counts warrant both TCs.
        compiler_params=pltpu.CompilerParams(dimension_semantics=("parallel",)),
    )(x, mrow, *params['layers_stacked'])
    return pooled.reshape(Np, HIDDEN)[:N]


@jax.jit
def latent_transformer(patch_emb, latent_mask, params):
    """LatentTransformer over padded patch embeddings [B, P, H]; whole batch in one call."""
    B, P, _ = patch_emb.shape
    Pp = _round_up(P, 8)                                   # sublane-aligned patch axis
    if Pp != P:
        patch_emb = jnp.pad(patch_emb, ((0, 0), (0, Pp - P), (0, 0)))
        latent_mask = jnp.pad(latent_mask, ((0, 0), (0, Pp - P)))
    x = patch_emb + params['pe'][None, :Pp, :]
    mrow = latent_mask.astype(jnp.float32)[:, None, :]
    out = pl.pallas_call(
        _latent_kernel,
        out_shape=jax.ShapeDtypeStruct((B, Pp, HIDDEN), jnp.float32),
    )(x, mrow, *params['layers_stacked'])
    return out[:, :P, :]


# ----------------------------- host-side dynamic patching (mirrors DynamicPatcher) -----------------------------
def find_patch_boundaries(entropies_np, seq_lens, threshold, min_size, max_size):
    min_size = max(1, min_size)
    max_size = max(min_size, max_size)
    batch_size, seq_len_padded = entropies_np.shape
    all_boundaries = []
    for i in range(batch_size):
        actual_len = seq_lens[i] if seq_lens is not None else seq_len_padded
        if actual_len == 0:
            all_boundaries.append([0])
            continue
        boundaries = [0]
        current_patch_start = 0
        j = 1
        while j < actual_len:
            patch_len = j - current_patch_start
            entropy_exceeded = entropies_np[i, j] > threshold
            min_size_met = patch_len >= min_size
            max_size_reached = patch_len >= max_size
            if max_size_reached or (entropy_exceeded and min_size_met):
                boundaries.append(j)
                current_patch_start = j
            j += 1
        if len(boundaries) > 1:
            last_patch_start = boundaries[-1]
            if actual_len - last_patch_start < min_size:
                boundaries.pop()
        all_boundaries.append(boundaries)
    return all_boundaries


# ----------------------------- BLTComponent forward -----------------------------
def blt_forward(byte_sequence, attention_mask, params):
    B, S = byte_sequence.shape
    if attention_mask is None:
        attention_mask = jnp.ones_like(byte_sequence)

    # 1) entropy estimation (single fused Pallas kernel over the whole batch)
    entropies = byte_lm_entropy(byte_sequence, attention_mask, params['byte_lm'])

    # 2) ONE host sync for everything the data-dependent patcher needs.
    # TODO(synk): find_patch_boundaries is a data-dependent Python while-loop in the reference;
    # kept host-side (a device-side lax.scan rewrite would remove this sync entirely).
    entropies_np, mask_np, byte_np = jax.device_get((entropies, attention_mask, byte_sequence))
    entropies_np = np.asarray(entropies_np)
    mask_np = np.asarray(mask_np)
    byte_np = np.asarray(byte_np)
    seq_lens = [int(v) for v in mask_np.sum(axis=1)]

    batch_boundaries = find_patch_boundaries(entropies_np, seq_lens,
                                             ENTROPY_THRESHOLD, MIN_PATCH_SIZE, MAX_PATCH_SIZE)

    all_patches = []
    emitted_counts = [0] * B       # counts only patches actually emitted -> scatter stays aligned
    for i in range(B):
        boundaries = batch_boundaries[i]
        n = len(boundaries)
        for j in range(n):
            start = boundaries[j]
            end = boundaries[j + 1] if j + 1 < n else seq_lens[i]
            patch = byte_np[i, start:end]
            if patch.shape[0] == 0:
                continue
            all_patches.append(patch)
            emitted_counts[i] += 1
    if not all_patches:
        return (jnp.zeros((B, 0, HIDDEN), jnp.float32), jnp.zeros((B, 0), bool))

    # pad every patch to MAX_PATCH_SIZE (static, sublane-aligned length for the kernel)
    n_real = len(all_patches)
    padded_patches = np.full((n_real, MAX_PATCH_SIZE), PAD_ID, np.int32)
    padded_masks = np.zeros((n_real, MAX_PATCH_SIZE), np.int32)
    for k, patch in enumerate(all_patches):
        padded_patches[k, :len(patch)] = patch
        padded_masks[k, :len(patch)] = 1

    # 3) local encoding of all patches (fused Pallas kernel, 8 patches per grid step)
    flat_emb = local_encoder(jnp.asarray(padded_patches), jnp.asarray(padded_masks),
                             params['local'])

    # 4) scatter flat patch embeddings into [B, max_num_patches, H] on device (no device_get)
    max_num_patches = max(emitted_counts)
    batch_idx, slot_idx = [], []
    for i, n in enumerate(emitted_counts):
        batch_idx.extend([i] * n)
        slot_idx.extend(range(n))
    bi = jnp.asarray(np.asarray(batch_idx, np.int32))
    si = jnp.asarray(np.asarray(slot_idx, np.int32))
    latent = jnp.zeros((B, max_num_patches, HIDDEN), jnp.float32).at[bi, si].set(flat_emb)
    lmask_np = np.zeros((B, max_num_patches), np.int32)
    for i, n in enumerate(emitted_counts):
        lmask_np[i, :n] = 1
    lmask = jnp.asarray(lmask_np)

    # 5) latent transformer over patch embeddings (single fused Pallas kernel)
    latent_out = latent_transformer(latent, lmask, params['latent'])
    return latent_out, lmask.astype(bool)


# ----------------------------- deterministic parameter init -----------------------------
def make_pos_encoding(max_len, d_model):
    position = np.arange(max_len, dtype=np.float32)[:, None]
    div_term = np.exp(np.arange(0, d_model, 2, dtype=np.float32)
                      * (-math.log(10000.0) / d_model))
    pe = np.zeros((max_len, d_model), np.float32)
    pe[:, 0::2] = np.sin(position * div_term)
    pe[:, 1::2] = np.cos(position * div_term)
    return jnp.asarray(pe)


def init_embedding(key, vocab, hidden):
    e = jax.random.normal(key, (vocab, hidden), jnp.float32) * 0.02
    return e.at[PAD_ID].set(0.0)   # padding_idx row zeroed


def init_layer_params(key):
    ks = jax.random.split(key, 4)
    std = 0.02

    def nrm(k, shape):
        return jax.random.normal(k, shape, jnp.float32) * std

    return {
        'ln1g': jnp.ones((1, HIDDEN), jnp.float32),
        'ln1b': jnp.zeros((1, HIDDEN), jnp.float32),
        'wqkv': nrm(ks[0], (HIDDEN, 3 * HIDDEN)),
        'bqkv': jnp.zeros((1, 3 * HIDDEN), jnp.float32),
        'wo': nrm(ks[1], (HIDDEN, HIDDEN)),
        'bo': jnp.zeros((1, HIDDEN), jnp.float32),
        'ln2g': jnp.ones((1, HIDDEN), jnp.float32),
        'ln2b': jnp.zeros((1, HIDDEN), jnp.float32),
        'w1': nrm(ks[2], (HIDDEN, FFN)),
        'b1': jnp.zeros((1, FFN), jnp.float32),
        'w2': nrm(ks[3], (FFN, HIDDEN)),
        'b2': jnp.zeros((1, HIDDEN), jnp.float32),
    }


def stack_layers(layer_list):
    """Stack per-layer params on a leading layer axis; big matrices in bf16 (MXU operands).
    wo is pre-split per head -> [layers, heads, head_dim, H] so kernels index it by (l, head)."""
    def stk(name, dtype):
        return jnp.stack([lp[name] for lp in layer_list]).astype(dtype)
    wo = stk('wo', jnp.bfloat16).reshape(len(layer_list), NUM_HEADS, HEAD_DIM, HIDDEN)
    return (stk('ln1g', jnp.float32), stk('ln1b', jnp.float32),
            stk('wqkv', jnp.bfloat16), stk('bqkv', jnp.float32),
            wo, stk('bo', jnp.float32),
            stk('ln2g', jnp.float32), stk('ln2b', jnp.float32),
            stk('w1', jnp.bfloat16), stk('b1', jnp.float32),
            stk('w2', jnp.bfloat16), stk('b2', jnp.float32))


def init_params(key):
    n_keys = 4 + BYTE_LM_LAYERS + LOCAL_LAYERS + LATENT_LAYERS
    keys = jax.random.split(key, n_keys)
    ki = iter(range(n_keys))
    byte_lm = {
        'embedding': init_embedding(keys[next(ki)], VOCAB, HIDDEN),
        'pe': make_pos_encoding(BYTE_LM_MAX_POS, HIDDEN),
        'layers_stacked': stack_layers(
            [init_layer_params(keys[next(ki)]) for _ in range(BYTE_LM_LAYERS)]),
        'wproj': (jax.random.normal(keys[next(ki)], (HIDDEN, 256), jnp.float32)
                  * 0.02).astype(jnp.bfloat16),
        'bproj': jnp.zeros((1, 256), jnp.float32),
    }
    local = {
        'embedding': init_embedding(keys[next(ki)], VOCAB, HIDDEN),
        'pe': make_pos_encoding(MAX_PATCH_SIZE, HIDDEN),
        'layers_stacked': stack_layers(
            [init_layer_params(keys[next(ki)]) for _ in range(LOCAL_LAYERS)]),
    }
    latent = {
        'pe': make_pos_encoding(LATENT_MAX_POS, HIDDEN),
        'layers_stacked': stack_layers(
            [init_layer_params(keys[next(ki)]) for _ in range(LATENT_LAYERS)]),
    }
    return {'byte_lm': byte_lm, 'local': local, 'latent': latent}


# ----------------------------- main -----------------------------
if __name__ == "__main__":
    root = jax.random.PRNGKey(0)
    pkey, dkey = jax.random.split(root)
    params = init_params(pkey)

    B, S = 2, 16
    byte_sequence = jax.random.randint(dkey, (B, S), 0, 256, dtype=jnp.int32)
    # second sequence has 4 padding positions to exercise the mask paths
    attention_mask = jnp.asarray(
        np.array([[1] * 16, [1] * 12 + [0] * 4], dtype=np.int32))

    latent_out, latent_mask = blt_forward(byte_sequence, attention_mask, params)
    jax.block_until_ready(latent_out)
    jax.block_until_ready(latent_mask)

    assert latent_out.ndim == 3 and latent_out.shape[0] == B and latent_out.shape[2] == HIDDEN
    assert latent_mask.shape == latent_out.shape[:2]
    assert bool(jnp.all(jnp.isfinite(latent_out)))
    print("KERNEL_OK")
</pallas_src>

<mosaic_0001>
module attributes {stable_mosaic.version = 11 : i64} {
  func.func @_byte_lm_entropy_kernel(%arg0: memref<2x16x32xf32, #tpu.memory_space<vmem>>, %arg1: memref<2x1x16xf32, #tpu.memory_space<vmem>>, %arg2: memref<1x1x32xf32, #tpu.memory_space<vmem>>, %arg3: memref<1x1x32xf32, #tpu.memory_space<vmem>>, %arg4: memref<1x32x96xbf16, #tpu.memory_space<vmem>>, %arg5: memref<1x1x96xf32, #tpu.memory_space<vmem>>, %arg6: memref<1x4x8x32xbf16, #tpu.memory_space<vmem>>, %arg7: memref<1x1x32xf32, #tpu.memory_space<vmem>>, %arg8: memref<1x1x32xf32, #tpu.memory_space<vmem>>, %arg9: memref<1x1x32xf32, #tpu.memory_space<vmem>>, %arg10: memref<1x32x64xbf16, #tpu.memory_space<vmem>>, %arg11: memref<1x1x64xf32, #tpu.memory_space<vmem>>, %arg12: memref<1x64x32xbf16, #tpu.memory_space<vmem>>, %arg13: memref<1x1x32xf32, #tpu.memory_space<vmem>>, %arg14: memref<32x256xbf16, #tpu.memory_space<vmem>>, %arg15: memref<1x256xf32, #tpu.memory_space<vmem>>, %arg16: memref<32x1xf32, #tpu.memory_space<vmem>>) attributes {dimension_semantics = [], scalar_prefetch = 0 : i64, scratch_operands = 0 : i64, tpu.core_type = #tpu.core_type<tc>} {
    %c0 = arith.constant 0 : index
    %c0_0 = arith.constant 0 : index
    %c0_1 = arith.constant 0 : index
    %0 = vector.load %arg0[%c0, %c0_0, %c0_1] : memref<2x16x32xf32, #tpu.memory_space<vmem>>, vector<2x16x32xf32>
    %1 = vector.shape_cast %0 : vector<2x16x32xf32> to vector<32x32xf32>
    %c0_2 = arith.constant 0 : index
    %c0_3 = arith.constant 0 : index
    %c0_4 = arith.constant 0 : index
    %2 = vector.load %arg1[%c0_2, %c0_3, %c0_4] : memref<2x1x16xf32, #tpu.memory_space<vmem>>, vector<2x1x16xf32>
    %cst = arith.constant 1.000000e+00 : f32
    %3 = vector.broadcast %cst : f32 to vector<2x1x16xf32>
    %4 = arith.subf %2, %3 : vector<2x1x16xf32>
    %cst_5 = arith.constant 1.000000e+30 : f32
    %5 = vector.broadcast %cst_5 : f32 to vector<2x1x16xf32>
    %6 = arith.mulf %4, %5 : vector<2x1x16xf32>
    %c0_6 = arith.constant 0 : index
    %c0_7 = arith.constant 0 : index
    %c0_8 = arith.constant 0 : index
    %7 = vector.load %arg2[%c0_6, %c0_7, %c0_8] : memref<1x1x32xf32, #tpu.memory_space<vmem>>, vector<1x1x32xf32>
    %8 = vector.shape_cast %7 : vector<1x1x32xf32> to vector<1x32xf32>
    %c0_9 = arith.constant 0 : index
    %c0_10 = arith.constant 0 : index
    %c0_11 = arith.constant 0 : index
    %9 = vector.load %arg3[%c0_9, %c0_10, %c0_11] : memref<1x1x32xf32, #tpu.memory_space<vmem>>, vector<1x1x32xf32>
    %10 = vector.shape_cast %9 : vector<1x1x32xf32> to vector<1x32xf32>
    %cst_12 = arith.constant dense<0.000000e+00> : vector<32xf32>
    %11 = vector.multi_reduction <add>, %1, %cst_12 [1] : vector<32x32xf32> to vector<32xf32>
    %12 = vector.shape_cast %11 : vector<32xf32> to vector<32x1xf32>
    %cst_13 = arith.constant 3.200000e+01 : f32
    %13 = vector.broadcast %cst_13 : f32 to vector<32x1xf32>
    %14 = arith.divf %12, %13 : vector<32x1xf32>
    %15 = vector.broadcast %14 : vector<32x1xf32> to vector<32x32xf32>
    %16 = arith.subf %1, %15 : vector<32x32xf32>
    %17 = arith.mulf %16, %16 : vector<32x32xf32>
    %cst_14 = arith.constant dense<0.000000e+00> : vector<32xf32>
    %18 = vector.multi_reduction <add>, %17, %cst_14 [1] : vector<32x32xf32> to vector<32xf32>
    %19 = vector.shape_cast %18 : vector<32xf32> to vector<32x1xf32>
    %cst_15 = arith.constant 3.200000e+01 : f32
    %20 = vector.broadcast %cst_15 : f32 to vector<32x1xf32>
    %21 = arith.divf %19, %20 : vector<32x1xf32>
    %22 = vector.broadcast %14 : vector<32x1xf32> to vector<32x32xf32>
    %23 = arith.subf %1, %22 : vector<32x32xf32>
    %cst_16 = arith.constant 9.99999974E-6 : f32
    %24 = vector.broadcast %cst_16 : f32 to vector<32x1xf32>
    %25 = arith.addf %21, %24 : vector<32x1xf32>
    %26 = math.rsqrt %25 : vector<32x1xf32>
    %27 = vector.broadcast %26 : vector<32x1xf32> to vector<32x32xf32>
    %28 = arith.mulf %23, %27 : vector<32x32xf32>
    %29 = vector.broadcast %8 : vector<1x32xf32> to vector<32x32xf32>
    %30 = arith.mulf %28, %29 : vector<32x32xf32>
    %31 = vector.broadcast %10 : vector<1x32xf32> to vector<32x32xf32>
    %32 = arith.addf %30, %31 : vector<32x32xf32>
    %33 = arith.truncf %32 : vector<32x32xf32> to vector<32x32xbf16>
    %c0_17 = arith.constant 0 : index
    %c0_18 = arith.constant 0 : index
    %c0_19 = arith.constant 0 : index
    %34 = vector.load %arg4[%c0_17, %c0_18, %c0_19] : memref<1x32x96xbf16, #tpu.memory_space<vmem>>, vector<1x32x96xbf16>
    %35 = vector.shape_cast %34 : vector<1x32x96xbf16> to vector<32x96xbf16>
    %cst_20 = arith.constant dense<0.000000e+00> : vector<32x96xf32>
    %36 = tpu.matmul %33, %35, %cst_20 {dimension_numbers = #tpu.dot_dimension_numbers<[1], [0], [0], [1], [0, 0, 1, 1], [], []>} : vector<32x32xbf16>, vector<32x96xbf16>, vector<32x96xf32> -> vector<32x96xf32>
    %c0_21 = arith.constant 0 : index
    %c0_22 = arith.constant 0 : index
    %c0_23 = arith.constant 0 : index
    %37 = vector.load %arg5[%c0_21, %c0_22, %c0_23] : memref<1x1x96xf32, #tpu.memory_space<vmem>>, vector<1x1x96xf32>
    %38 = vector.shape_cast %37 : vector<1x1x96xf32> to vector<1x96xf32>
    %39 = vector.broadcast %38 : vector<1x96xf32> to vector<32x96xf32>
    %40 = arith.addf %36, %39 : vector<32x96xf32>
    %41 = vector.shape_cast %40 : vector<32x96xf32> to vector<2x16x96xf32>
    %cst_24 = arith.constant 0.000000e+00 : f32
    %42 = vector.broadcast %cst_24 : f32 to vector<32x32xf32>
    %43 = vector.extract_strided_slice %41 {offsets = [0, 0, 0], sizes = [2, 16, 8], strides = [1, 1, 1]} : vector<2x16x96xf32> to vector<2x16x8xf32>
    %44 = vector.extract_strided_slice %41 {offsets = [0, 0, 32], sizes = [2, 16, 8], strides = [1, 1, 1]} : vector<2x16x96xf32> to vector<2x16x8xf32>
    %45 = vector.extract_strided_slice %41 {offsets = [0, 0, 64], sizes = [2, 16, 8], strides = [1, 1, 1]} : vector<2x16x96xf32> to vector<2x16x8xf32>
    %46 = arith.truncf %43 : vector<2x16x8xf32> to vector<2x16x8xbf16>
    %47 = arith.truncf %44 : vector<2x16x8xf32> to vector<2x16x8xbf16>
    "tpu.trace_start"() <{level = 10 : i32, message = "bqd,bkd->bqk"}> : () -> ()
    %cst_25 = arith.constant dense<0.000000e+00> : vector<2x16x16xf32>
    %48 = tpu.matmul %46, %47, %cst_25 {dimension_numbers = #tpu.dot_dimension_numbers<[2], [2], [1], [1], [0, 0, 0, 1, 1, 1], [0], [0]>} : vector<2x16x8xbf16>, vector<2x16x8xbf16>, vector<2x16x16xf32> -> vector<2x16x16xf32>
    "tpu.trace_stop"() : () -> ()
    %cst_26 = arith.constant 0.353553385 : f32
    %49 = vector.broadcast %cst_26 : f32 to vector<2x16x16xf32>
    %50 = arith.mulf %48, %49 : vector<2x16x16xf32>
    %51 = vector.broadcast %6 : vector<2x1x16xf32> to vector<2x16x16xf32>
    %52 = arith.addf %50, %51 : vector<2x16x16xf32>
    %cst_27 = arith.constant dense<0xFF800000> : vector<2x16xf32>
    %53 = vector.multi_reduction <maximumf>, %52, %cst_27 [2] : vector<2x16x16xf32> to vector<2x16xf32>
    %54 = vector.shape_cast %53 : vector<2x16xf32> to vector<2x16x1xf32>
    %55 = vector.broadcast %54 : vector<2x16x1xf32> to vector<2x16x16xf32>
    %56 = arith.subf %52, %55 : vector<2x16x16xf32>
    %57 = math.exp %56 : vector<2x16x16xf32>
    %cst_28 = arith.constant dense<0.000000e+00> : vector<2x16xf32>
    %58 = vector.multi_reduction <add>, %57, %cst_28 [2] : vector<2x16x16xf32> to vector<2x16xf32>
    %59 = vector.shape_cast %58 : vector<2x16xf32> to vector<2x16x1xf32>
    %60 = tpu.reciprocal %59 {approx = true} : vector<2x16x1xf32> -> vector<2x16x1xf32>
    %61 = vector.broadcast %60 : vector<2x16x1xf32> to vector<2x16x16xf32>
    %62 = arith.mulf %57, %61 : vector<2x16x16xf32>
    %63 = arith.truncf %62 : vector<2x16x16xf32> to vector<2x16x16xbf16>
    %64 = arith.truncf %45 : vector<2x16x8xf32> to vector<2x16x8xbf16>
    "tpu.trace_start"() <{level = 10 : i32, message = "bqk,bkd->bqd"}> : () -> ()
    %cst_29 = arith.constant dense<0.000000e+00> : vector<2x16x8xf32>
    %65 = tpu.matmul %63, %64, %cst_29 {dimension_numbers = #tpu.dot_dimension_numbers<[2], [1], [1], [2], [0, 0, 0, 1, 1, 2], [0], [0]>} : vector<2x16x16xbf16>, vector<2x16x8xbf16>, vector<2x16x8xf32> -> vector<2x16x8xf32>
    "tpu.trace_stop"() : () -> ()
    %66 = vector.shape_cast %65 : vector<2x16x8xf32> to vector<32x8xf32>
    %67 = arith.truncf %66 : vector<32x8xf32> to vector<32x8xbf16>
    %c0_30 = arith.constant 0 : index
    %c0_31 = arith.constant 0 : index
    %c0_32 = arith.constant 0 : index
    %c0_33 = arith.constant 0 : index
    %68 = vector.load %arg6[%c0_30, %c0_31, %c0_32, %c0_33] : memref<1x4x8x32xbf16, #tpu.memory_space<vmem>>, vector<1x1x8x32xbf16>
    %69 = vector.shape_cast %68 : vector<1x1x8x32xbf16> to vector<8x32xbf16>
    %cst_34 = arith.constant dense<0.000000e+00> : vector<32x32xf32>
    %70 = tpu.matmul %67, %69, %cst_34 {dimension_numbers = #tpu.dot_dimension_numbers<[1], [0], [0], [1], [0, 0, 1, 1], [], []>} : vector<32x8xbf16>, vector<8x32xbf16>, vector<32x32xf32> -> vector<32x32xf32>
    %71 = arith.addf %42, %70 : vector<32x32xf32>
    %72 = vector.extract_strided_slice %41 {offsets = [0, 0, 8], sizes = [2, 16, 8], strides = [1, 1, 1]} : vector<2x16x96xf32> to vector<2x16x8xf32>
    %73 = vector.extract_strided_slice %41 {offsets = [0, 0, 40], sizes = [2, 16, 8], strides = [1, 1, 1]} : vector<2x16x96xf32> to vector<2x16x8xf32>
    %74 = vector.extract_strided_slice %41 {offsets = [0, 0, 72], sizes = [2, 16, 8], strides = [1, 1, 1]} : vector<2x16x96xf32> to vector<2x16x8xf32>
    %75 = arith.truncf %72 : vector<2x16x8xf32> to vector<2x16x8xbf16>
    %76 = arith.truncf %73 : vector<2x16x8xf32> to vector<2x16x8xbf16>
    "tpu.trace_start"() <{level = 10 : i32, message = "bqd,bkd->bqk"}> : () -> ()
    %cst_35 = arith.constant dense<0.000000e+00> : vector<2x16x16xf32>
    %77 = tpu.matmul %75, %76, %cst_35 {dimension_numbers = #tpu.dot_dimension_numbers<[2], [2], [1], [1], [0, 0, 0, 1, 1, 1], [0], [0]>} : vector<2x16x8xbf16>, vector<2x16x8xbf16>, vector<2x16x16xf32> -> vector<2x16x16xf32>
    "tpu.trace_stop"() : () -> ()
    %cst_36 = arith.constant 0.353553385 : f32
    %78 = vector.broadcast %cst_36 : f32 to vector<2x16x16xf32>
    %79 = arith.mulf %77, %78 : vector<2x16x16xf32>
    %80 = vector.broadcast %6 : vector<2x1x16xf32> to vector<2x16x16xf32>
    %81 = arith.addf %79, %80 : vector<2x16x16xf32>
    %cst_37 = arith.constant dense<0xFF800000> : vector<2x16xf32>
    %82 = vector.multi_reduction <maximumf>, %81, %cst_37 [2] : vector<2x16x16xf32> to vector<2x16xf32>
    %83 = vector.shape_cast %82 : vector<2x16xf32> to vector<2x16x1xf32>
    %84 = vector.broadcast %83 : vector<2x16x1xf32> to vector<2x16x16xf32>
    %85 = arith.subf %81, %84 : vector<2x16x16xf32>
    %86 = math.exp %85 : vector<2x16x16xf32>
    %cst_38 = arith.constant dense<0.000000e+00> : vector<2x16xf32>
    %87 = vector.multi_reduction <add>, %86, %cst_38 [2] : vector<2x16x16xf32> to vector<2x16xf32>
    %88 = vector.shape_cast %87 : vector<2x16xf32> to vector<2x16x1xf32>
    %89 = tpu.reciprocal %88 {approx = true} : vector<2x16x1xf32> -> vector<2x16x1xf32>
    %90 = vector.broadcast %89 : vector<2x16x1xf32> to vector<2x16x16xf32>
    %91 = arith.mulf %86, %90 : vector<2x16x16xf32>
    %92 = arith.truncf %91 : vector<2x16x16xf32> to vector<2x16x16xbf16>
    %93 = arith.truncf %74 : vector<2x16x8xf32> to vector<2x16x8xbf16>
    "tpu.trace_start"() <{level = 10 : i32, message = "bqk,bkd->bqd"}> : () -> ()
    %cst_39 = arith.constant dense<0.000000e+00> : vector<2x16x8xf32>
    %94 = tpu.matmul %92, %93, %cst_39 {dimension_numbers = #tpu.dot_dimension_numbers<[2], [1], [1], [2], [0, 0, 0, 1, 1, 2], [0], [0]>} : vector<2x16x16xbf16>, vector<2x16x8xbf16>, vector<2x16x8xf32> -> vector<2x16x8xf32>
    "tpu.trace_stop"() : () -> ()
    %95 = vector.shape_cast %94 : vector<2x16x8xf32> to vector<32x8xf32>
    %96 = arith.truncf %95 : vector<32x8xf32> to vector<32x8xbf16>
    %c0_40 = arith.constant 0 : index
    %c1 = arith.constant 1 : index
    %c0_41 = arith.constant 0 : index
    %c0_42 = arith.constant 0 : index
    %97 = vector.load %arg6[%c0_40, %c1, %c0_41, %c0_42] : memref<1x4x8x32xbf16, #tpu.memory_space<vmem>>, vector<1x1x8x32xbf16>
    %98 = vector.shape_cast %97 : vector<1x1x8x32xbf16> to vector<8x32xbf16>
    %cst_43 = arith.constant dense<0.000000e+00> : vector<32x32xf32>
    %99 = tpu.matmul %96, %98, %cst_43 {dimension_numbers = #tpu.dot_dimension_numbers<[1], [0], [0], [1], [0, 0, 1, 1], [], []>} : vector<32x8xbf16>, vector<8x32xbf16>, vector<32x32xf32> -> vector<32x32xf32>
    %100 = arith.addf %71, %99 : vector<32x32xf32>
    %101 = vector.extract_strided_slice %41 {offsets = [0, 0, 16], sizes = [2, 16, 8], strides = [1, 1, 1]} : vector<2x16x96xf32> to vector<2x16x8xf32>
    %102 = vector.extract_strided_slice %41 {offsets = [0, 0, 48], sizes = [2, 16, 8], strides = [1, 1, 1]} : vector<2x16x96xf32> to vector<2x16x8xf32>
    %103 = vector.extract_strided_slice %41 {offsets = [0, 0, 80], sizes = [2, 16, 8], strides = [1, 1, 1]} : vector<2x16x96xf32> to vector<2x16x8xf32>
    %104 = arith.truncf %101 : vector<2x16x8xf32> to vector<2x16x8xbf16>
    %105 = arith.truncf %102 : vector<2x16x8xf32> to vector<2x16x8xbf16>
    "tpu.trace_start"() <{level = 10 : i32, message = "bqd,bkd->bqk"}> : () -> ()
    %cst_44 = arith.constant dense<0.000000e+00> : vector<2x16x16xf32>
    %106 = tpu.matmul %104, %105, %cst_44 {dimension_numbers = #tpu.dot_dimension_numbers<[2], [2], [1], [1], [0, 0, 0, 1, 1, 1], [0], [0]>} : vector<2x16x8xbf16>, vector<2x16x8xbf16>, vector<2x16x16xf32> -> vector<2x16x16xf32>
    "tpu.trace_stop"() : () -> ()
    %cst_45 = arith.constant 0.353553385 : f32
    %107 = vector.broadcast %cst_45 : f32 to vector<2x16x16xf32>
    %108 = arith.mulf %106, %107 : vector<2x16x16xf32>
    %109 = vector.broadcast %6 : vector<2x1x16xf32> to vector<2x16x16xf32>
    %110 = arith.addf %108, %109 : vector<2x16x16xf32>
    %cst_46 = arith.constant dense<0xFF800000> : vector<2x16xf32>
    %111 = vector.multi_reduction <maximumf>, %110, %cst_46 [2] : vector<2x16x16xf32> to vector<2x16xf32>
    %112 = vector.shape_cast %111 : vector<2x16xf32> to vector<2x16x1xf32>
    %113 = vector.broadcast %112 : vector<2x16x1xf32> to vector<2x16x16xf32>
    %114 = arith.subf %110, %113 : vector<2x16x16xf32>
    %115 = math.exp %114 : vector<2x16x16xf32>
    %cst_47 = arith.constant dense<0.000000e+00> : vector<2x16xf32>
    %116 = vector.multi_reduction <add>, %115, %cst_47 [2] : vector<2x16x16xf32> to vector<2x16xf32>
    %117 = vector.shape_cast %116 : vector<2x16xf32> to vector<2x16x1xf32>
    %118 = tpu.reciprocal %117 {approx = true} : vector<2x16x1xf32> -> vector<2x16x1xf32>
    %119 = vector.broadcast %118 : vector<2x16x1xf32> to vector<2x16x16xf32>
    %120 = arith.mulf %115, %119 : vector<2x16x16xf32>
    %121 = arith.truncf %120 : vector<2x16x16xf32> to vector<2x16x16xbf16>
    %122 = arith.truncf %103 : vector<2x16x8xf32> to vector<2x16x8xbf16>
    "tpu.trace_start"() <{level = 10 : i32, message = "bqk,bkd->bqd"}> : () -> ()
    %cst_48 = arith.constant dense<0.000000e+00> : vector<2x16x8xf32>
    %123 = tpu.matmul %121, %122, %cst_48 {dimension_numbers = #tpu.dot_dimension_numbers<[2], [1], [1], [2], [0, 0, 0, 1, 1, 2], [0], [0]>} : vector<2x16x16xbf16>, vector<2x16x8xbf16>, vector<2x16x8xf32> -> vector<2x16x8xf32>
    "tpu.trace_stop"() : () -> ()
    %124 = vector.shape_cast %123 : vector<2x16x8xf32> to vector<32x8xf32>
    %125 = arith.truncf %124 : vector<32x8xf32> to vector<32x8xbf16>
    %c0_49 = arith.constant 0 : index
    %c2 = arith.constant 2 : index
    %c0_50 = arith.constant 0 : index
    %c0_51 = arith.constant 0 : index
    %126 = vector.load %arg6[%c0_49, %c2, %c0_50, %c0_51] : memref<1x4x8x32xbf16, #tpu.memory_space<vmem>>, vector<1x1x8x32xbf16>
    %127 = vector.shape_cast %126 : vector<1x1x8x32xbf16> to vector<8x32xbf16>
    %cst_52 = arith.constant dense<0.000000e+00> : vector<32x32xf32>
    %128 = tpu.matmul %125, %127, %cst_52 {dimension_numbers = #tpu.dot_dimension_numbers<[1], [0], [0], [1], [0, 0, 1, 1], [], []>} : vector<32x8xbf16>, vector<8x32xbf16>, vector<32x32xf32> -> vector<32x32xf32>
    %129 = arith.addf %100, %128 : vector<32x32xf32>
    %130 = vector.extract_strided_slice %41 {offsets = [0, 0, 24], sizes = [2, 16, 8], strides = [1, 1, 1]} : vector<2x16x96xf32> to vector<2x16x8xf32>
    %131 = vector.extract_strided_slice %41 {offsets = [0, 0, 56], sizes = [2, 16, 8], strides = [1, 1, 1]} : vector<2x16x96xf32> to vector<2x16x8xf32>
    %132 = vector.extract_strided_slice %41 {offsets = [0, 0, 88], sizes = [2, 16, 8], strides = [1, 1, 1]} : vector<2x16x96xf32> to vector<2x16x8xf32>
    %133 = arith.truncf %130 : vector<2x16x8xf32> to vector<2x16x8xbf16>
    %134 = arith.truncf %131 : vector<2x16x8xf32> to vector<2x16x8xbf16>
    "tpu.trace_start"() <{level = 10 : i32, message = "bqd,bkd->bqk"}> : () -> ()
    %cst_53 = arith.constant dense<0.000000e+00> : vector<2x16x16xf32>
    %135 = tpu.matmul %133, %134, %cst_53 {dimension_numbers = #tpu.dot_dimension_numbers<[2], [2], [1], [1], [0, 0, 0, 1, 1, 1], [0], [0]>} : vector<2x16x8xbf16>, vector<2x16x8xbf16>, vector<2x16x16xf32> -> vector<2x16x16xf32>
    "tpu.trace_stop"() : () -> ()
    %cst_54 = arith.constant 0.353553385 : f32
    %136 = vector.broadcast %cst_54 : f32 to vector<2x16x16xf32>
    %137 = arith.mulf %135, %136 : vector<2x16x16xf32>
    %138 = vector.broadcast %6 : vector<2x1x16xf32> to vector<2x16x16xf32>
    %139 = arith.addf %137, %138 : vector<2x16x16xf32>
    %cst_55 = arith.constant dense<0xFF800000> : vector<2x16xf32>
    %140 = vector.multi_reduction <maximumf>, %139, %cst_55 [2] : vector<2x16x16xf32> to vector<2x16xf32>
    %141 = vector.shape_cast %140 : vector<2x16xf32> to vector<2x16x1xf32>
    %142 = vector.broadcast %141 : vector<2x16x1xf32> to vector<2x16x16xf32>
    %143 = arith.subf %139, %142 : vector<2x16x16xf32>
    %144 = math.exp %143 : vector<2x16x16xf32>
    %cst_56 = arith.constant dense<0.000000e+00> : vector<2x16xf32>
    %145 = vector.multi_reduction <add>, %144, %cst_56 [2] : vector<2x16x16xf32> to vector<2x16xf32>
    %146 = vector.shape_cast %145 : vector<2x16xf32> to vector<2x16x1xf32>
    %147 = tpu.reciprocal %146 {approx = true} : vector<2x16x1xf32> -> vector<2x16x1xf32>
    %148 = vector.broadcast %147 : vector<2x16x1xf32> to vector<2x16x16xf32>
    %149 = arith.mulf %144, %148 : vector<2x16x16xf32>
    %150 = arith.truncf %149 : vector<2x16x16xf32> to vector<2x16x16xbf16>
    %151 = arith.truncf %132 : vector<2x16x8xf32> to vector<2x16x8xbf16>
    "tpu.trace_start"() <{level = 10 : i32, message = "bqk,bkd->bqd"}> : () -> ()
    %cst_57 = arith.constant dense<0.000000e+00> : vector<2x16x8xf32>
    %152 = tpu.matmul %150, %151, %cst_57 {dimension_numbers = #tpu.dot_dimension_numbers<[2], [1], [1], [2], [0, 0, 0, 1, 1, 2], [0], [0]>} : vector<2x16x16xbf16>, vector<2x16x8xbf16>, vector<2x16x8xf32> -> vector<2x16x8xf32>
    "tpu.trace_stop"() : () -> ()
    %153 = vector.shape_cast %152 : vector<2x16x8xf32> to vector<32x8xf32>
    %154 = arith.truncf %153 : vector<32x8xf32> to vector<32x8xbf16>
    %c0_58 = arith.constant 0 : index
    %c3 = arith.constant 3 : index
    %c0_59 = arith.constant 0 : index
    %c0_60 = arith.constant 0 : index
    %155 = vector.load %arg6[%c0_58, %c3, %c0_59, %c0_60] : memref<1x4x8x32xbf16, #tpu.memory_space<vmem>>, vector<1x1x8x32xbf16>
    %156 = vector.shape_cast %155 : vector<1x1x8x32xbf16> to vector<8x32xbf16>
    %cst_61 = arith.constant dense<0.000000e+00> : vector<32x32xf32>
    %157 = tpu.matmul %154, %156, %cst_61 {dimension_numbers = #tpu.dot_dimension_numbers<[1], [0], [0], [1], [0, 0, 1, 1], [], []>} : vector<32x8xbf16>, vector<8x32xbf16>, vector<32x32xf32> -> vector<32x32xf32>
    %158 = arith.addf %129, %157 : vector<32x32xf32>
    %159 = arith.addf %1, %158 : vector<32x32xf32>
    %c0_62 = arith.constant 0 : index
    %c0_63 = arith.constant 0 : index
    %c0_64 = arith.constant 0 : index
    %160 = vector.load %arg7[%c0_62, %c0_63, %c0_64] : memref<1x1x32xf32, #tpu.memory_space<vmem>>, vector<1x1x32xf32>
    %161 = vector.shape_cast %160 : vector<1x1x32xf32> to vector<1x32xf32>
    %162 = vector.broadcast %161 : vector<1x32xf32> to vector<32x32xf32>
    %163 = arith.addf %159, %162 : vector<32x32xf32>
    %c0_65 = arith.constant 0 : index
    %c0_66 = arith.constant 0 : index
    %c0_67 = arith.constant 0 : index
    %164 = vector.load %arg8[%c0_65, %c0_66, %c0_67] : memref<1x1x32xf32, #tpu.memory_space<vmem>>, vector<1x1x32xf32>
    %165 = vector.shape_cast %164 : vector<1x1x32xf32> to vector<1x32xf32>
    %c0_68 = arith.constant 0 : index
    %c0_69 = arith.constant 0 : index
    %c0_70 = arith.constant 0 : index
    %166 = vector.load %arg9[%c0_68, %c0_69, %c0_70] : memref<1x1x32xf32, #tpu.memory_space<vmem>>, vector<1x1x32xf32>
    %167 = vector.shape_cast %166 : vector<1x1x32xf32> to vector<1x32xf32>
    %cst_71 = arith.constant dense<0.000000e+00> : vector<32xf32>
    %168 = vector.multi_reduction <add>, %163, %cst_71 [1] : vector<32x32xf32> to vector<32xf32>
    %169 = vector.shape_cast %168 : vector<32xf32> to vector<32x1xf32>
    %cst_72 = arith.constant 3.200000e+01 : f32
    %170 = vector.broadcast %cst_72 : f32 to vector<32x1xf32>
    %171 = arith.divf %169, %170 : vector<32x1xf32>
    %172 = vector.broadcast %171 : vector<32x1xf32> to vector<32x32xf32>
    %173 = arith.subf %163, %172 : vector<32x32xf32>
    %174 = arith.mulf %173, %173 : vector<32x32xf32>
    %cst_73 = arith.constant dense<0.000000e+00> : vector<32xf32>
    %175 = vector.multi_reduction <add>, %174, %cst_73 [1] : vector<32x32xf32> to vector<32xf32>
    %176 = vector.shape_cast %175 : vector<32xf32> to vector<32x1xf32>
    %cst_74 = arith.constant 3.200000e+01 : f32
    %177 = vector.broadcast %cst_74 : f32 to vector<32x1xf32>
    %178 = arith.divf %176, %177 : vector<32x1xf32>
    %179 = vector.broadcast %171 : vector<32x1xf32> to vector<32x32xf32>
    %180 = arith.subf %163, %179 : vector<32x32xf32>
    %cst_75 = arith.constant 9.99999974E-6 : f32
    %181 = vector.broadcast %cst_75 : f32 to vector<32x1xf32>
    %182 = arith.addf %178, %181 : vector<32x1xf32>
    %183 = math.rsqrt %182 : vector<32x1xf32>
    %184 = vector.broadcast %183 : vector<32x1xf32> to vector<32x32xf32>
    %185 = arith.mulf %180, %184 : vector<32x32xf32>
    %186 = vector.broadcast %165 : vector<1x32xf32> to vector<32x32xf32>
    %187 = arith.mulf %185, %186 : vector<32x32xf32>
    %188 = vector.broadcast %167 : vector<1x32xf32> to vector<32x32xf32>
    %189 = arith.addf %187, %188 : vector<32x32xf32>
    %190 = arith.truncf %189 : vector<32x32xf32> to vector<32x32xbf16>
    %c0_76 = arith.constant 0 : index
    %c0_77 = arith.constant 0 : index
    %c0_78 = arith.constant 0 : index
    %191 = vector.load %arg10[%c0_76, %c0_77, %c0_78] : memref<1x32x64xbf16, #tpu.memory_space<vmem>>, vector<1x32x64xbf16>
    %192 = vector.shape_cast %191 : vector<1x32x64xbf16> to vector<32x64xbf16>
    %cst_79 = arith.constant dense<0.000000e+00> : vector<32x64xf32>
    %193 = tpu.matmul %190, %192, %cst_79 {dimension_numbers = #tpu.dot_dimension_numbers<[1], [0], [0], [1], [0, 0, 1, 1], [], []>} : vector<32x32xbf16>, vector<32x64xbf16>, vector<32x64xf32> -> vector<32x64xf32>
    %c0_80 = arith.constant 0 : index
    %c0_81 = arith.constant 0 : index
    %c0_82 = arith.constant 0 : index
    %194 = vector.load %arg11[%c0_80, %c0_81, %c0_82] : memref<1x1x64xf32, #tpu.memory_space<vmem>>, vector<1x1x64xf32>
    %195 = vector.shape_cast %194 : vector<1x1x64xf32> to vector<1x64xf32>
    %196 = vector.broadcast %195 : vector<1x64xf32> to vector<32x64xf32>
    %197 = arith.addf %193, %196 : vector<32x64xf32>
    %198 = arith.mulf %197, %197 : vector<32x64xf32>
    %199 = arith.mulf %197, %198 : vector<32x64xf32>
    %cst_83 = arith.constant 4.471500e-02 : f32
    %200 = vector.broadcast %cst_83 : f32 to vector<32x64xf32>
    %201 = arith.mulf %200, %199 : vector<32x64xf32>
    %202 = arith.addf %197, %201 : vector<32x64xf32>
    %cst_84 = arith.constant 0.797884583 : f32
    %203 = vector.broadcast %cst_84 : f32 to vector<32x64xf32>
    %204 = arith.mulf %203, %202 : vector<32x64xf32>
    %205 = math.tanh %204 : vector<32x64xf32>
    %cst_85 = arith.constant 1.000000e+00 : f32
    %206 = vector.broadcast %cst_85 : f32 to vector<32x64xf32>
    %207 = arith.addf %206, %205 : vector<32x64xf32>
    %cst_86 = arith.constant 5.000000e-01 : f32
    %208 = vector.broadcast %cst_86 : f32 to vector<32x64xf32>
    %209 = arith.mulf %208, %207 : vector<32x64xf32>
    %210 = arith.mulf %197, %209 : vector<32x64xf32>
    %211 = arith.truncf %210 : vector<32x64xf32> to vector<32x64xbf16>
    %c0_87 = arith.constant 0 : index
    %c0_88 = arith.constant 0 : index
    %c0_89 = arith.constant 0 : index
    %212 = vector.load %arg12[%c0_87, %c0_88, %c0_89] : memref<1x64x32xbf16, #tpu.memory_space<vmem>>, vector<1x64x32xbf16>
    %213 = vector.shape_cast %212 : vector<1x64x32xbf16> to vector<64x32xbf16>
    %cst_90 = arith.constant dense<0.000000e+00> : vector<32x32xf32>
    %214 = tpu.matmul %211, %213, %cst_90 {dimension_numbers = #tpu.dot_dimension_numbers<[1], [0], [0], [1], [0, 0, 1, 1], [], []>} : vector<32x64xbf16>, vector<64x32xbf16>, vector<32x32xf32> -> vector<32x32xf32>
    %c0_91 = arith.constant 0 : index
    %c0_92 = arith.constant 0 : index
    %c0_93 = arith.constant 0 : index
    %215 = vector.load %arg13[%c0_91, %c0_92, %c0_93] : memref<1x1x32xf32, #tpu.memory_space<vmem>>, vector<1x1x32xf32>
    %216 = vector.shape_cast %215 : vector<1x1x32xf32> to vector<1x32xf32>
    %217 = vector.broadcast %216 : vector<1x32xf32> to vector<32x32xf32>
    %218 = arith.addf %214, %217 : vector<32x32xf32>
    %219 = arith.addf %163, %218 : vector<32x32xf32>
    %220 = arith.truncf %219 : vector<32x32xf32> to vector<32x32xbf16>
    %c0_94 = arith.constant 0 : index
    %c0_95 = arith.constant 0 : index
    %221 = vector.load %arg14[%c0_94, %c0_95] : memref<32x256xbf16, #tpu.memory_space<vmem>>, vector<32x256xbf16>
    %cst_96 = arith.constant dense<0.000000e+00> : vector<32x256xf32>
    %222 = tpu.matmul %220, %221, %cst_96 {dimension_numbers = #tpu.dot_dimension_numbers<[1], [0], [0], [1], [0, 0, 1, 1], [], []>} : vector<32x32xbf16>, vector<32x256xbf16>, vector<32x256xf32> -> vector<32x256xf32>
    %c0_97 = arith.constant 0 : index
    %c0_98 = arith.constant 0 : index
    %223 = vector.load %arg15[%c0_97, %c0_98] : memref<1x256xf32, #tpu.memory_space<vmem>>, vector<1x256xf32>
    %224 = vector.broadcast %223 : vector<1x256xf32> to vector<32x256xf32>
    %225 = arith.addf %222, %224 : vector<32x256xf32>
    %cst_99 = arith.constant dense<0xFF800000> : vector<32xf32>
    %226 = vector.multi_reduction <maximumf>, %225, %cst_99 [1] : vector<32x256xf32> to vector<32xf32>
    %227 = vector.shape_cast %226 : vector<32xf32> to vector<32x1xf32>
    %228 = vector.broadcast %227 : vector<32x1xf32> to vector<32x256xf32>
    %229 = arith.subf %225, %228 : vector<32x256xf32>
    %230 = math.exp %229 : vector<32x256xf32>
    %cst_100 = arith.constant dense<0.000000e+00> : vector<32xf32>
    %231 = vector.multi_reduction <add>, %230, %cst_100 [1] : vector<32x256xf32> to vector<32xf32>
    %232 = vector.shape_cast %231 : vector<32xf32> to vector<32x1xf32>
    %233 = arith.mulf %230, %229 : vector<32x256xf32>
    %cst_101 = arith.constant dense<0.000000e+00> : vector<32xf32>
    %234 = vector.multi_reduction <add>, %233, %cst_101 [1] : vector<32x256xf32> to vector<32xf32>
    %235 = vector.shape_cast %234 : vector<32xf32> to vector<32x1xf32>
    %236 = math.log %232 : vector<32x1xf32>
    %237 = arith.divf %235, %232 : vector<32x1xf32>
    %238 = arith.subf %236, %237 : vector<32x1xf32>
    %c0_102 = arith.constant 0 : index
    %c0_103 = arith.constant 0 : index
    %239 = vector.load %arg16[%c0_102, %c0_103] : memref<32x1xf32, #tpu.memory_space<vmem>>, vector<32x1xf32>
    tpu.vector_store %arg16[%c0_102, %c0_103], %238 {strides = array<i32>} : memref<32x1xf32, #tpu.memory_space<vmem>>, vector<32x1xf32>,
    return
  }
}

</mosaic_0001>

<llo_original>
// kernel: byte_lm_entropy.1
$region0: #{byte_lm_entropy.1}
  #allocation0 [shape = 'u32[]', space=smem, size = 0x4, offset = 0x4, fixed_abs, tag = 'smem constant byte address 0x4 - core index']
  #allocation1 [shape = 'u32[144,128]{1,0:T(1,128)}', space=vmem, size = 0x12000, scoped, tag = 'internal scratch']
  %s0 = inlined_call_operand.vmem [shape: f32[2,16,32], index: 0, kind: input, shape index: {}]
  %s1 = inlined_call_operand.vmem [shape: f32[2,1,16], index: 1, kind: input, shape index: {}]
  %s2 = inlined_call_operand.vmem [shape: f32[1,1,32], index: 2, kind: input, shape index: {}]
  %s3 = inlined_call_operand.vmem [shape: f32[1,1,32], index: 3, kind: input, shape index: {}]
  %s4 = inlined_call_operand.vmem [shape: bf16[1,32,96], index: 4, kind: input, shape index: {}]
  %s5 = inlined_call_operand.vmem [shape: f32[1,1,96], index: 5, kind: input, shape index: {}]
  %s6 = inlined_call_operand.vmem [shape: bf16[1,4,8,32], index: 6, kind: input, shape index: {}]
  %s7 = inlined_call_operand.vmem [shape: f32[1,1,32], index: 7, kind: input, shape index: {}]
  %s8 = inlined_call_operand.vmem [shape: f32[1,1,32], index: 8, kind: input, shape index: {}]
  %s9 = inlined_call_operand.vmem [shape: f32[1,1,32], index: 9, kind: input, shape index: {}]
  %s10 = inlined_call_operand.vmem [shape: bf16[1,32,64], index: 10, kind: input, shape index: {}]
  %s11 = inlined_call_operand.vmem [shape: f32[1,1,64], index: 11, kind: input, shape index: {}]
  %s12 = inlined_call_operand.vmem [shape: bf16[1,64,32], index: 12, kind: input, shape index: {}]
  %s13 = inlined_call_operand.vmem [shape: f32[1,1,32], index: 13, kind: input, shape index: {}]
  %s14 = inlined_call_operand.vmem [shape: bf16[32,256], index: 14, kind: input, shape index: {}]
  %s15 = inlined_call_operand.vmem [shape: f32[1,256], index: 15, kind: input, shape index: {}]
  %s16 = inlined_call_operand.vmem [shape: f32[32,1], index: 16, kind: output, shape index: {}]
  %s17 = sld [smem:[#allocation0]]
  $region74: #{byte_lm_entropy.1} parent=0
    _
  %s19 = ssub.s32 1, %s17
  %s20 = scalar_select 0, %s19, %s17
  // Predicated region
  $region2: #{byte_lm_entropy.1} parent=0 // pred_check
    _
  $region3: #{byte_lm_entropy.1} parent=0 // pred_check_branch
    %22 = sbr.rel (0) target = $region5
  $region4: #{byte_lm_entropy.1} parent=0 // pred_region
    _
  $region5: #{byte_lm_entropy.1} parent=0 // pred_fallthru
    _
  // Predicated region
  $region6: #{byte_lm_entropy.1} parent=0 // pred_check
    _
  $region7: #{byte_lm_entropy.1} parent=0 // pred_check_branch
    %24 = sbr.rel (0) target = $region9
  $region8: #{byte_lm_entropy.1} parent=0 // pred_region
    _
  $region9: #{byte_lm_entropy.1} parent=0 // pred_fallthru
    _
  // Predicated region
  $region10: #{byte_lm_entropy.1} parent=0 // pred_check
    _
  $region11: #{byte_lm_entropy.1} parent=0 // pred_check_branch
    %26 = sbr.rel (0) target = $region13
  $region12: #{byte_lm_entropy.1} parent=0 // pred_region
    _
  $region13: #{byte_lm_entropy.1} parent=0 // pred_fallthru
    _
  // Predicated region
  $region14: #{byte_lm_entropy.1} parent=0 // pred_check
    _
  $region15: #{byte_lm_entropy.1} parent=0 // pred_check_branch
    %28 = sbr.rel (0) target = $region17
  $region16: #{byte_lm_entropy.1} parent=0 // pred_region
    _
  $region17: #{byte_lm_entropy.1} parent=0 // pred_fallthru
    _
  // Predicated region
  $region18: #{byte_lm_entropy.1} parent=0 // pred_check
    _
  $region19: #{byte_lm_entropy.1} parent=0 // pred_check_branch
    %30 = sbr.rel (0) target = $region21
  $region20: #{byte_lm_entropy.1} parent=0 // pred_region
    _
  $region21: #{byte_lm_entropy.1} parent=0 // pred_fallthru
    _
  // Predicated region
  $region22: #{byte_lm_entropy.1} parent=0 // pred_check
    _
  $region23: #{byte_lm_entropy.1} parent=0 // pred_check_branch
    %32 = sbr.rel (0) target = $region25
  $region24: #{byte_lm_entropy.1} parent=0 // pred_region
    _
  $region25: #{byte_lm_entropy.1} parent=0 // pred_fallthru
    _
  // Predicated region
  $region26: #{byte_lm_entropy.1} parent=0 // pred_check
    _
  $region27: #{byte_lm_entropy.1} parent=0 // pred_check_branch
    %34 = sbr.rel (0) target = $region29
  $region28: #{byte_lm_entropy.1} parent=0 // pred_region
    _
  $region29: #{byte_lm_entropy.1} parent=0 // pred_fallthru
    _
  // Predicated region
  $region30: #{byte_lm_entropy.1} parent=0 // pred_check
    _
  $region31: #{byte_lm_entropy.1} parent=0 // pred_check_branch
    %36 = sbr.rel (0) target = $region33
  $region32: #{byte_lm_entropy.1} parent=0 // pred_region
    _
  $region33: #{byte_lm_entropy.1} parent=0 // pred_fallthru
    _
  // Predicated region
  $region34: #{byte_lm_entropy.1} parent=0 // pred_check
    _
  $region35: #{byte_lm_entropy.1} parent=0 // pred_check_branch
    %38 = sbr.rel (0) target = $region37
  $region36: #{byte_lm_entropy.1} parent=0 // pred_region
    _
  $region37: #{byte_lm_entropy.1} parent=0 // pred_fallthru
    _
  // Predicated region
  $region38: #{byte_lm_entropy.1} parent=0 // pred_check
    _
  $region39: #{byte_lm_entropy.1} parent=0 // pred_check_branch
    %40 = sbr.rel (0) target = $region41
  $region40: #{byte_lm_entropy.1} parent=0 // pred_region
    _
  $region41: #{byte_lm_entropy.1} parent=0 // pred_fallthru
    _
  // Predicated region
  $region42: #{byte_lm_entropy.1} parent=0 // pred_check
    _
  $region43: #{byte_lm_entropy.1} parent=0 // pred_check_branch
    %42 = sbr.rel (0) target = $region45
  $region44: #{byte_lm_entropy.1} parent=0 // pred_region
    _
  $region45: #{byte_lm_entropy.1} parent=0 // pred_fallthru
    _
  // Predicated region
  $region46: #{byte_lm_entropy.1} parent=0 // pred_check
    _
  $region47: #{byte_lm_entropy.1} parent=0 // pred_check_branch
    %44 = sbr.rel (0) target = $region49
  $region48: #{byte_lm_entropy.1} parent=0 // pred_region
    _
  $region49: #{byte_lm_entropy.1} parent=0 // pred_fallthru
    _
  // Predicated region
  $region50: #{byte_lm_entropy.1} parent=0 // pred_check
    _
  $region51: #{byte_lm_entropy.1} parent=0 // pred_check_branch
    %46 = sbr.rel (0) target = $region53
  $region52: #{byte_lm_entropy.1} parent=0 // pred_region
    _
  $region53: #{byte_lm_entropy.1} parent=0 // pred_fallthru
    _
  // Predicated region
  $region54: #{byte_lm_entropy.1} parent=0 // pred_check
    _
  $region55: #{byte_lm_entropy.1} parent=0 // pred_check_branch
    %48 = sbr.rel (0) target = $region57
  $region56: #{byte_lm_entropy.1} parent=0 // pred_region
    _
  $region57: #{byte_lm_entropy.1} parent=0 // pred_fallthru
    _
  // Predicated region
  $region58: #{byte_lm_entropy.1} parent=0 // pred_check
    _
  $region59: #{byte_lm_entropy.1} parent=0 // pred_check_branch
    %50 = sbr.rel (0) target = $region61
  $region60: #{byte_lm_entropy.1} parent=0 // pred_region
    _
  $region61: #{byte_lm_entropy.1} parent=0 // pred_fallthru
    _
  // Predicated region
  $region62: #{byte_lm_entropy.1} parent=0 // pred_check
    _
  $region63: #{byte_lm_entropy.1} parent=0 // pred_check_branch
    %52 = sbr.rel (0) target = $region65
  $region64: #{byte_lm_entropy.1} parent=0 // pred_region
    _
  $region65: #{byte_lm_entropy.1} parent=0 // pred_fallthru
    _
  %v54 = vld [vmem:[%s0] sm:$0xff]
  %v55 = vld [vmem:[%s0 + $0x8] sm:$0xff]
  %v56 = vld [vmem:[%s0 + $0x10] sm:$0xff]
  %v57 = vld [vmem:[%s0 + $0x18] sm:$0xff]
  %v58 = vld [vmem:[%s1] sm:$0x1]
  %v59 = vld [vmem:[%s1 + $0x1] sm:$0x1]
  %v60 = vsub.f32 %v58, 1.0
  %v61 = vsub.f32 %v59, 1.0
  %v62 = vmul.f32 %v60, 1e+30
  %v63 = vmul.f32 %v61, 1e+30
  %v64 = vld [vmem:[%s2] sm:$0x1]
  %v65 = vld [vmem:[%s3] sm:$0x1]
  %vm66 = vcmask 261120
  %v67 = vsel %vm66, %v54, 0.0
  %68 = vadd.xlane.f32.xlu0 %v67
  %v69 = vpop.xlane.xlu0 %68
  %v70 = vsel %vm66, %v55, 0.0
  %71 = vadd.xlane.f32.xlu0 %v70
  %v72 = vpop.xlane.xlu0 %71
  %v73 = vsel %vm66, %v56, 0.0
  %74 = vadd.xlane.f32.xlu0 %v73
  %v75 = vpop.xlane.xlu0 %74
  %v76 = vsel %vm66, %v57, 0.0
  %77 = vadd.xlane.f32.xlu0 %v76
  %v78 = vpop.xlane.xlu0 %77
  %v79 = vrcp.pop 32.0
  %v80 = vmul.f32 %v69, %v79
  %v81 = vmul.f32 %v72, %v79
  %v82 = vmul.f32 %v75, %v79
  %v83 = vmul.f32 %v78, %v79
  %v84 = vsub.f32 %v54, %v80
  %v85 = vsub.f32 %v55, %v81
  %v86 = vsub.f32 %v56, %v82
  %v87 = vsub.f32 %v57, %v83
  %v88 = vmul.f32 %v84, %v84
  %v89 = vmul.f32 %v85, %v85
  %v90 = vmul.f32 %v86, %v86
  %v91 = vmul.f32 %v87, %v87
  %v92 = vsel %vm66, %v88, 0.0
  %93 = vadd.xlane.f32.xlu0 %v92
  %v94 = vpop.xlane.xlu0 %93
  %v95 = vsel %vm66, %v89, 0.0
  %96 = vadd.xlane.f32.xlu0 %v95
  %v97 = vpop.xlane.xlu0 %96
  %v98 = vsel %vm66, %v90, 0.0
  %99 = vadd.xlane.f32.xlu0 %v98
  %v100 = vpop.xlane.xlu0 %99
  %v101 = vsel %vm66, %v91, 0.0
  %102 = vadd.xlane.f32.xlu0 %v101
  %v103 = vpop.xlane.xlu0 %102
  %v104 = vmul.f32 %v94, %v79
  %v105 = vmul.f32 %v97, %v79
  %v106 = vmul.f32 %v100, %v79
  %v107 = vmul.f32 %v103, %v79
  %v108 = vadd.f32 %v104, 1e-05
  %v109 = vadd.f32 %v105, 1e-05
  %v110 = vadd.f32 %v106, 1e-05
  %v111 = vadd.f32 %v107, 1e-05
  %v112 = vrsqrt.pop %v108
  %v113 = vrsqrt.pop %v109
  %v114 = vrsqrt.pop %v110
  %v115 = vrsqrt.pop %v111
  %v116 = vmul.f32 %v84, %v112
  %v117 = vmul.f32 %v85, %v113
  %v118 = vmul.f32 %v86, %v114
  %v119 = vmul.f32 %v87, %v115
  %v121 = vlaneseq
  %v122 = vshrl.u32 %v121, 7
  %v123 = vsub.s32 0, %v122
  %v124 = vrot.slane %v64, %v123
  %v126 = vmul.f32 %v116, %v124
  %v127 = vmul.f32 %v117, %v124
  %v128 = vmul.f32 %v118, %v124
  %v129 = vmul.f32 %v119, %v124
  %v131 = vlaneseq
  %v132 = vshrl.u32 %v131, 7
  %v133 = vsub.s32 0, %v132
  %v134 = vrot.slane %v65, %v133
  %v136 = vadd.f32 %v126, %v134
  %v137 = vadd.f32 %v127, %v134
  %v138 = vadd.f32 %v128, %v134
  %v139 = vadd.f32 %v129, %v134
  %v140 = vpack.c.bf16 %v137, %v136
  %v141 = vpack.c.bf16 %v139, %v138
  %v142 = vld [vmem:[%s4] sm:$0xf]
  %v143 = vld [vmem:[%s4 + $0x4] sm:$0xf]
  %v144 = vld [vmem:[%s4 + $0x8] sm:$0xf]
  %v145 = vld [vmem:[%s4 + $0xc] sm:$0xf]
  %v146 = vld [vmem:[%s5] sm:$0x1]
  %v148 = vlaneseq
  %v149 = vshrl.u32 %v148, 7
  %v150 = vsub.s32 0, %v149
  %v151 = vrot.slane %v146, %v150
  %v157 = vunpack.c.l.b16 %v142
  %v158 = vunpack.c.l.b16 %v143
  %v159 = vunpack.c.l.b16 %v144
  %v160 = vunpack.c.l.b16 %v145
  %v161 = vpack.c.b16 %v158, %v157
  %v162 = vpack.c.b16 %v160, %v159
  %v166 = vsel %vm66, %v140, 0
  %v169 = vsel %vm66, %v141, 0
  %171 = vmatprep.subr.bf16.mxu0 0
  %172 = vmatpush1.bf16.msra.mxu0 %v161
  %173 = vmatprep.subr.bf16.mxu0 0
  %174 = vmatpush1.bf16.msra.mxu0 %v162
  %175 = vmatprep.subr.bf16.mxu0 0
  %176 = vmatpush1.bf16.msra.mxu0 0
  %177 = vmatprep.subr.bf16.mxu0 0
  %178 = vmatpush1.bf16.msra.mxu0 0
  %179 = vmatprep.subr.bf16.mxu0 0
  %180 = vmatpush1.bf16.msra.mxu0 0
  %181 = vmatprep.subr.bf16.mxu0 0
  %182 = vmatpush1.bf16.msra.mxu0 0
  %183 = vmatprep.subr.bf16.mxu0 0
  %184 = vmatpush1.bf16.msra.mxu0 0
  %185 = vmatprep.subr.bf16.mxu0 0
  %186 = vmatpush1.bf16.msra.mxu0 0
  %187 = vmatprep.subr.bf16.mxu0 0
  %188 = vmatpush1.bf16.msra.mxu0 0
  %189 = vmatprep.subr.bf16.mxu0 0
  %190 = vmatpush1.bf16.msra.mxu0 0
  %191 = vmatprep.subr.bf16.mxu0 0
  %192 = vmatpush1.bf16.msra.mxu0 0
  %193 = vmatprep.subr.bf16.mxu0 0
  %194 = vmatpush1.bf16.msra.mxu0 0
  %195 = vmatprep.subr.bf16.mxu0 0
  %196 = vmatpush1.bf16.msra.mxu0 0
  %197 = vmatprep.subr.bf16.mxu0 0
  %198 = vmatpush1.bf16.msra.mxu0 0
  %199 = vmatprep.subr.bf16.mxu0 0
  %200 = vmatpush1.bf16.msra.mxu0 0
  %201 = vmatprep.subr.bf16.mxu0 0
  %202 = vmatpush1.bf16.msra.mxu0 0
  %203 = vmatprep.mubr.bf16.mxu0 0
  %204 = vmatmul.mubr.bf16.gmra.mrb[0].mxu0 %v166
  %v205 = vpop.f32.mrb[0].mxu0
  %v206 = vadd.f32 %v151, %v205
  %v207 = vpop.f32.mrb[0].mxu0
  %v208 = vpop.f32.mrb[0].mxu0
  %v209 = vadd.f32 %v151, %v208
  %v210 = vpop.f32.mrb[0].mxu0
  %211 = vmatprep.mubr.bf16.mxu0 0
  %212 = vmatmul.mubr.bf16.gmra.mrb[0].mxu0 %v169
  %v213 = vpop.f32.mrb[0].mxu0
  %v214 = vadd.f32 %v151, %v213
  %v215 = vpop.f32.mrb[0].mxu0
  %v216 = vpop.f32.mrb[0].mxu0
  %v217 = vadd.f32 %v151, %v216
  %v218 = vpop.f32.mrb[0].mxu0
  %219 = vdwg.mxu0
  %v220 = vpack.c.bf16 %v209, %v206
  %v221 = vpack.c.bf16 %v217, %v214
  %223 = vrot.lane.b32.xlu0 %v220, 96
  %v224 = vpop.permute.xlu0 %223
  %vm225 = vcmask 64512
  %v227 = vsel %vm225, %v220, 0
  %v230 = vsel %vm225, %v224, 0
  %232 = vmatprep.subr.bf16.mxu0 0
  %233 = vmatpush1.bf16.xpose.msra.mxu0 %v230
  %234 = vmatprep.subr.bf16.mxu0 0
  %235 = vmatpush1.bf16.xpose.msra.mxu0 0
  %236 = vmatprep.subr.bf16.mxu0 0
  %237 = vmatpush1.bf16.xpose.msra.mxu0 0
  %238 = vmatprep.subr.bf16.mxu0 0
  %239 = vmatpush1.bf16.xpose.msra.mxu0 0
  %240 = vmatprep.subr.bf16.mxu0 0
  %241 = vmatpush1.bf16.xpose.msra.mxu0 0
  %242 = vmatprep.subr.bf16.mxu0 0
  %243 = vmatpush1.bf16.xpose.msra.mxu0 0
  %244 = vmatprep.subr.bf16.mxu0 0
  %245 = vmatpush1.bf16.xpose.msra.mxu0 0
  %246 = vmatprep.subr.bf16.mxu0 0
  %247 = vmatpush1.bf16.xpose.msra.mxu0 0
  %248 = vmatprep.subr.bf16.mxu0 0
  %249 = vmatpush1.bf16.xpose.msra.mxu0 0
  %250 = vmatprep.subr.bf16.mxu0 0
  %251 = vmatpush1.bf16.xpose.msra.mxu0 0
  %252 = vmatprep.subr.bf16.mxu0 0
  %253 = vmatpush1.bf16.xpose.msra.mxu0 0
  %254 = vmatprep.subr.bf16.mxu0 0
  %255 = vmatpush1.bf16.xpose.msra.mxu0 0
  %256 = vmatprep.subr.bf16.mxu0 0
  %257 = vmatpush1.bf16.xpose.msra.mxu0 0
  %258 = vmatprep.subr.bf16.mxu0 0
  %259 = vmatpush1.bf16.xpose.msra.mxu0 0
  %260 = vmatprep.subr.bf16.mxu0 0
  %261 = vmatpush1.bf16.xpose.msra.mxu0 0
  %262 = vmatprep.subr.bf16.mxu0 0
  %263 = vmatpush1.bf16.xpose.msra.mxu0 0
  %264 = vmatprep.mubr.bf16.mxu0 0
  %265 = vmatmul.mubr.bf16.gmra.mrb[0].mxu0 %v227
  %v266 = vpop.f32.mrb[0].mxu0
  %v267 = vadd.f32 0.0, %v266
  %v268 = vpop.f32.mrb[0].mxu0
  %v269 = vpop.f32.mrb[0].mxu0
  %v270 = vadd.f32 0.0, %v269
  %v271 = vpop.f32.mrb[0].mxu0
  %272 = vdwg.mxu0
  %274 = vrot.lane.b32.xlu0 %v221, 96
  %v275 = vpop.permute.xlu0 %274
  %v277 = vsel %vm225, %v221, 0
  %v280 = vsel %vm225, %v275, 0
  %282 = vmatprep.subr.bf16.mxu0 0
  %283 = vmatpush1.bf16.xpose.msra.mxu0 %v280
  %284 = vmatprep.subr.bf16.mxu0 0
  %285 = vmatpush1.bf16.xpose.msra.mxu0 0
  %286 = vmatprep.subr.bf16.mxu0 0
  %287 = vmatpush1.bf16.xpose.msra.mxu0 0
  %288 = vmatprep.subr.bf16.mxu0 0
  %289 = vmatpush1.bf16.xpose.msra.mxu0 0
  %290 = vmatprep.subr.bf16.mxu0 0
  %291 = vmatpush1.bf16.xpose.msra.mxu0 0
  %292 = vmatprep.subr.bf16.mxu0 0
  %293 = vmatpush1.bf16.xpose.msra.mxu0 0
  %294 = vmatprep.subr.bf16.mxu0 0
  %295 = vmatpush1.bf16.xpose.msra.mxu0 0
  %296 = vmatprep.subr.bf16.mxu0 0
  %297 = vmatpush1.bf16.xpose.msra.mxu0 0
  %298 = vmatprep.subr.bf16.mxu0 0
  %299 = vmatpush1.bf16.xpose.msra.mxu0 0
  %300 = vmatprep.subr.bf16.mxu0 0
  %301 = vmatpush1.bf16.xpose.msra.mxu0 0
  %302 = vmatprep.subr.bf16.mxu0 0
  %303 = vmatpush1.bf16.xpose.msra.mxu0 0
  %304 = vmatprep.subr.bf16.mxu0 0
  %305 = vmatpush1.bf16.xpose.msra.mxu0 0
  %306 = vmatprep.subr.bf16.mxu0 0
  %307 = vmatpush1.bf16.xpose.msra.mxu0 0
  %308 = vmatprep.subr.bf16.mxu0 0
  %309 = vmatpush1.bf16.xpose.msra.mxu0 0
  %310 = vmatprep.subr.bf16.mxu0 0
  %311 = vmatpush1.bf16.xpose.msra.mxu0 0
  %312 = vmatprep.subr.bf16.mxu0 0
  %313 = vmatpush1.bf16.xpose.msra.mxu0 0
  %314 = vmatprep.mubr.bf16.mxu0 0
  %315 = vmatmul.mubr.bf16.gmra.mrb[0].mxu0 %v277
  %v316 = vpop.f32.mrb[0].mxu0
  %v317 = vadd.f32 0.0, %v316
  %v318 = vpop.f32.mrb[0].mxu0
  %v319 = vpop.f32.mrb[0].mxu0
  %v320 = vadd.f32 0.0, %v319
  %v321 = vpop.f32.mrb[0].mxu0
  %322 = vdwg.mxu0
  %v323 = vmul.f32 %v267, 0.35355338
  %v324 = vmul.f32 %v270, 0.35355338
  %v325 = vmul.f32 %v317, 0.35355338
  %v326 = vmul.f32 %v320, 0.35355338
  %v329 = vlaneseq
  %v330 = vshrl.u32 %v329, 7
  %v331 = vsub.s32 0, %v330
  %v332 = vrot.slane %v62, %v331
  %v333 = vlaneseq
  %v334 = vshrl.u32 %v333, 7
  %v335 = vsub.s32 0, %v334
  %v336 = vrot.slane %v63, %v335
  %v339 = vadd.f32 %v323, %v332
  %v340 = vadd.f32 %v324, %v332
  %v341 = vadd.f32 %v325, %v336
  %v342 = vadd.f32 %v326, %v336
  %vm343 = vcmask 130048
  %v344 = vsel %vm343, %v339, -inf
  %345 = vmax.xlane.f32.xlu0 %v344
  %v346 = vpop.xlane.xlu0 %345
  %v347 = vsel %vm343, %v340, -inf
  %348 = vmax.xlane.f32.xlu0 %v347
  %v349 = vpop.xlane.xlu0 %348
  %v350 = vsel %vm343, %v341, -inf
  %351 = vmax.xlane.f32.xlu0 %v350
  %v352 = vpop.xlane.xlu0 %351
  %v353 = vsel %vm343, %v342, -inf
  %354 = vmax.xlane.f32.xlu0 %v353
  %v355 = vpop.xlane.xlu0 %354
  %v356 = vsub.f32 %v339, %v346
  %v357 = vsub.f32 %v340, %v349
  %v358 = vsub.f32 %v341, %v352
  %v359 = vsub.f32 %v342, %v355
  %v360 = vmul.f32 %v356, 1.442695
  %v361 = vpow.pop %v360
  %v362 = vmul.f32 %v357, 1.442695
  %v363 = vpow.pop %v362
  %v364 = vmul.f32 %v358, 1.442695
  %v365 = vpow.pop %v364
  %v366 = vmul.f32 %v359, 1.442695
  %v367 = vpow.pop %v366
  %v368 = vsel %vm343, %v361, 0.0
  %369 = vadd.xlane.f32.xlu0 %v368
  %v370 = vpop.xlane.xlu0 %369
  %v371 = vsel %vm343, %v363, 0.0
  %372 = vadd.xlane.f32.xlu0 %v371
  %v373 = vpop.xlane.xlu0 %372
  %v374 = vsel %vm343, %v365, 0.0
  %375 = vadd.xlane.f32.xlu0 %v374
  %v376 = vpop.xlane.xlu0 %375
  %v377 = vsel %vm343, %v367, 0.0
  %378 = vadd.xlane.f32.xlu0 %v377
  %v379 = vpop.xlane.xlu0 %378
  %v380 = vrcp.pop %v370
  %v381 = vrcp.pop %v373
  %v382 = vrcp.pop %v376
  %v383 = vrcp.pop %v379
  %v384 = vmul.f32 %v361, %v380
  %v385 = vmul.f32 %v363, %v381
  %v386 = vmul.f32 %v365, %v382
  %v387 = vmul.f32 %v367, %v383
  %v388 = vpack.c.bf16 %v385, %v384
  %v389 = vpack.c.bf16 %v387, %v386
  %390 = vrot.lane.b32.xlu0 %v220, 64
  %v391 = vpop.permute.xlu0 %390
  %v394 = vsel %vm343, %v388, 0
  %396 = vmatprep.subr.bf16.mxu0 0
  %397 = vmatpush1.bf16.msra.mxu0 %v391
  %398 = vmatprep.subr.bf16.mxu0 0
  %399 = vmatpush1.bf16.msra.mxu0 0
  %400 = vmatprep.subr.bf16.mxu0 0
  %401 = vmatpush1.bf16.msra.mxu0 0
  %402 = vmatprep.subr.bf16.mxu0 0
  %403 = vmatpush1.bf16.msra.mxu0 0
  %404 = vmatprep.subr.bf16.mxu0 0
  %405 = vmatpush1.bf16.msra.mxu0 0
  %406 = vmatprep.subr.bf16.mxu0 0
  %407 = vmatpush1.bf16.msra.mxu0 0
  %408 = vmatprep.subr.bf16.mxu0 0
  %409 = vmatpush1.bf16.msra.mxu0 0
  %410 = vmatprep.subr.bf16.mxu0 0
  %411 = vmatpush1.bf16.msra.mxu0 0
  %412 = vmatprep.subr.bf16.mxu0 0
  %413 = vmatpush1.bf16.msra.mxu0 0
  %414 = vmatprep.subr.bf16.mxu0 0
  %415 = vmatpush1.bf16.msra.mxu0 0
  %416 = vmatprep.subr.bf16.mxu0 0
  %417 = vmatpush1.bf16.msra.mxu0 0
  %418 = vmatprep.subr.bf16.mxu0 0
  %419 = vmatpush1.bf16.msra.mxu0 0
  %420 = vmatprep.subr.bf16.mxu0 0
  %421 = vmatpush1.bf16.msra.mxu0 0
  %422 = vmatprep.subr.bf16.mxu0 0
  %423 = vmatpush1.bf16.msra.mxu0 0
  %424 = vmatprep.subr.bf16.mxu0 0
  %425 = vmatpush1.bf16.msra.mxu0 0
  %426 = vmatprep.subr.bf16.mxu0 0
  %427 = vmatpush1.bf16.msra.mxu0 0
  %428 = vmatprep.mubr.bf16.mxu0 0
  %429 = vmatmul.mubr.bf16.gmra.mrb[0].mxu0 %v394
  %v430 = vpop.f32.mrb[0].mxu0
  %v431 = vadd.f32 0.0, %v430
  %v432 = vpop.f32.mrb[0].mxu0
  %v433 = vpop.f32.mrb[0].mxu0
  %v434 = vadd.f32 0.0, %v433
  %v435 = vpop.f32.mrb[0].mxu0
  %436 = vdwg.mxu0
  %437 = vrot.lane.b32.xlu0 %v221, 64
  %v438 = vpop.permute.xlu0 %437
  %v441 = vsel %vm343, %v389, 0
  %443 = vmatprep.subr.bf16.mxu0 0
  %444 = vmatpush1.bf16.msra.mxu0 %v438
  %445 = vmatprep.subr.bf16.mxu0 0
  %446 = vmatpush1.bf16.msra.mxu0 0
  %447 = vmatprep.subr.bf16.mxu0 0
  %448 = vmatpush1.bf16.msra.mxu0 0
  %449 = vmatprep.subr.bf16.mxu0 0
  %450 = vmatpush1.bf16.msra.mxu0 0
  %451 = vmatprep.subr.bf16.mxu0 0
  %452 = vmatpush1.bf16.msra.mxu0 0
  %453 = vmatprep.subr.bf16.mxu0 0
  %454 = vmatpush1.bf16.msra.mxu0 0
  %455 = vmatprep.subr.bf16.mxu0 0
  %456 = vmatpush1.bf16.msra.mxu0 0
  %457 = vmatprep.subr.bf16.mxu0 0
  %458 = vmatpush1.bf16.msra.mxu0 0
  %459 = vmatprep.subr.bf16.mxu0 0
  %460 = vmatpush1.bf16.msra.mxu0 0
  %461 = vmatprep.subr.bf16.mxu0 0
  %462 = vmatpush1.bf16.msra.mxu0 0
  %463 = vmatprep.subr.bf16.mxu0 0
  %464 = vmatpush1.bf16.msra.mxu0 0
  %465 = vmatprep.subr.bf16.mxu0 0
  %466 = vmatpush1.bf16.msra.mxu0 0
  %467 = vmatprep.subr.bf16.mxu0 0
  %468 = vmatpush1.bf16.msra.mxu0 0
  %469 = vmatprep.subr.bf16.mxu0 0
  %470 = vmatpush1.bf16.msra.mxu0 0
  %471 = vmatprep.subr.bf16.mxu0 0
  %472 = vmatpush1.bf16.msra.mxu0 0
  %473 = vmatprep.subr.bf16.mxu0 0
  %474 = vmatpush1.bf16.msra.mxu0 0
  %475 = vmatprep.mubr.bf16.mxu0 0
  %476 = vmatmul.mubr.bf16.gmra.mrb[0].mxu0 %v441
  %v477 = vpop.f32.mrb[0].mxu0
  %v478 = vadd.f32 0.0, %v477
  %v479 = vpop.f32.mrb[0].mxu0
  %v480 = vpop.f32.mrb[0].mxu0
  %v481 = vadd.f32 0.0, %v480
  %v482 = vpop.f32.mrb[0].mxu0
  %483 = vdwg.mxu0
  %v484 = vpack.c.bf16 %v434, %v431
  %v485 = vpack.c.bf16 %v481, %v478
  %v486 = vld [vmem:[%s6] sm:$0xf]
  %487 = vrot.lane.b32.xlu0 %v220, 120
  %v488 = vpop.permute.xlu0 %487
  %489 = vrot.lane.b32.xlu0 %v220, 88
  %v490 = vpop.permute.xlu0 %489
  %v492 = vsel %vm225, %v488, 0
  %v495 = vsel %vm225, %v490, 0
  %497 = vmatprep.subr.bf16.mxu0 0
  %498 = vmatpush1.bf16.xpose.msra.mxu0 %v495
  %499 = vmatprep.subr.bf16.mxu0 0
  %500 = vmatpush1.bf16.xpose.msra.mxu0 0
  %501 = vmatprep.subr.bf16.mxu0 0
  %502 = vmatpush1.bf16.xpose.msra.mxu0 0
  %503 = vmatprep.subr.bf16.mxu0 0
  %504 = vmatpush1.bf16.xpose.msra.mxu0 0
  %505 = vmatprep.subr.bf16.mxu0 0
  %506 = vmatpush1.bf16.xpose.msra.mxu0 0
  %507 = vmatprep.subr.bf16.mxu0 0
  %508 = vmatpush1.bf16.xpose.msra.mxu0 0
  %509 = vmatprep.subr.bf16.mxu0 0
  %510 = vmatpush1.bf16.xpose.msra.mxu0 0
  %511 = vmatprep.subr.bf16.mxu0 0
  %512 = vmatpush1.bf16.xpose.msra.mxu0 0
  %513 = vmatprep.subr.bf16.mxu0 0
  %514 = vmatpush1.bf16.xpose.msra.mxu0 0
  %515 = vmatprep.subr.bf16.mxu0 0
  %516 = vmatpush1.bf16.xpose.msra.mxu0 0
  %517 = vmatprep.subr.bf16.mxu0 0
  %518 = vmatpush1.bf16.xpose.msra.mxu0 0
  %519 = vmatprep.subr.bf16.mxu0 0
  %520 = vmatpush1.bf16.xpose.msra.mxu0 0
  %521 = vmatprep.subr.bf16.mxu0 0
  %522 = vmatpush1.bf16.xpose.msra.mxu0 0
  %523 = vmatprep.subr.bf16.mxu0 0
  %524 = vmatpush1.bf16.xpose.msra.mxu0 0
  %525 = vmatprep.subr.bf16.mxu0 0
  %526 = vmatpush1.bf16.xpose.msra.mxu0 0
  %527 = vmatprep.subr.bf16.mxu0 0
  %528 = vmatpush1.bf16.xpose.msra.mxu0 0
  %529 = vmatprep.mubr.bf16.mxu0 0
  %530 = vmatmul.mubr.bf16.gmra.mrb[0].mxu0 %v492
  %v531 = vpop.f32.mrb[0].mxu0
  %v532 = vadd.f32 0.0, %v531
  %v533 = vpop.f32.mrb[0].mxu0
  %v534 = vpop.f32.mrb[0].mxu0
  %v535 = vadd.f32 0.0, %v534
  %v536 = vpop.f32.mrb[0].mxu0
  %537 = vdwg.mxu0
  %538 = vrot.lane.b32.xlu0 %v221, 120
  %v539 = vpop.permute.xlu0 %538
  %540 = vrot.lane.b32.xlu0 %v221, 88
  %v541 = vpop.permute.xlu0 %540
  %v543 = vsel %vm225, %v539, 0
  %v546 = vsel %vm225, %v541, 0
  %548 = vmatprep.subr.bf16.mxu0 0
  %549 = vmatpush1.bf16.xpose.msra.mxu0 %v546
  %550 = vmatprep.subr.bf16.mxu0 0
  %551 = vmatpush1.bf16.xpose.msra.mxu0 0
  %552 = vmatprep.subr.bf16.mxu0 0
  %553 = vmatpush1.bf16.xpose.msra.mxu0 0
  %554 = vmatprep.subr.bf16.mxu0 0
  %555 = vmatpush1.bf16.xpose.msra.mxu0 0
  %556 = vmatprep.subr.bf16.mxu0 0
  %557 = vmatpush1.bf16.xpose.msra.mxu0 0
  %558 = vmatprep.subr.bf16.mxu0 0
  %559 = vmatpush1.bf16.xpose.msra.mxu0 0
  %560 = vmatprep.subr.bf16.mxu0 0
  %561 = vmatpush1.bf16.xpose.msra.mxu0 0
  %562 = vmatprep.subr.bf16.mxu0 0
  %563 = vmatpush1.bf16.xpose.msra.mxu0 0
  %564 = vmatprep.subr.bf16.mxu0 0
  %565 = vmatpush1.bf16.xpose.msra.mxu0 0
  %566 = vmatprep.subr.bf16.mxu0 0
  %567 = vmatpush1.bf16.xpose.msra.mxu0 0
  %568 = vmatprep.subr.bf16.mxu0 0
  %569 = vmatpush1.bf16.xpose.msra.mxu0 0
  %570 = vmatprep.subr.bf16.mxu0 0
  %571 = vmatpush1.bf16.xpose.msra.mxu0 0
  %572 = vmatprep.subr.bf16.mxu0 0
  %573 = vmatpush1.bf16.xpose.msra.mxu0 0
  %574 = vmatprep.subr.bf16.mxu0 0
  %575 = vmatpush1.bf16.xpose.msra.mxu0 0
  %576 = vmatprep.subr.bf16.mxu0 0
  %577 = vmatpush1.bf16.xpose.msra.mxu0 0
  %578 = vmatprep.subr.bf16.mxu0 0
  %579 = vmatpush1.bf16.xpose.msra.mxu0 0
  %580 = vmatprep.mubr.bf16.mxu0 0
  %581 = vmatmul.mubr.bf16.gmra.mrb[0].mxu0 %v543
  %v582 = vpop.f32.mrb[0].mxu0
  %v583 = vadd.f32 0.0, %v582
  %v584 = vpop.f32.mrb[0].mxu0
  %v585 = vpop.f32.mrb[0].mxu0
  %v586 = vadd.f32 0.0, %v585
  %v587 = vpop.f32.mrb[0].mxu0
  %588 = vdwg.mxu0
  %v589 = vmul.f32 %v532, 0.35355338
  %v590 = vmul.f32 %v535, 0.35355338
  %v591 = vmul.f32 %v583, 0.35355338
  %v592 = vmul.f32 %v586, 0.35355338
  %v593 = vadd.f32 %v589, %v332
  %v594 = vadd.f32 %v590, %v332
  %v595 = vadd.f32 %v591, %v336
  %v596 = vadd.f32 %v592, %v336
  %v597 = vsel %vm343, %v593, -inf
  %598 = vmax.xlane.f32.xlu0 %v597
  %v599 = vpop.xlane.xlu0 %598
  %v600 = vsel %vm343, %v594, -inf
  %601 = vmax.xlane.f32.xlu0 %v600
  %v602 = vpop.xlane.xlu0 %601
  %v603 = vsel %vm343, %v595, -inf
  %604 = vmax.xlane.f32.xlu0 %v603
  %v605 = vpop.xlane.xlu0 %604
  %v606 = vsel %vm343, %v596, -inf
  %607 = vmax.xlane.f32.xlu0 %v606
  %v608 = vpop.xlane.xlu0 %607
  %v609 = vsub.f32 %v593, %v599
  %v610 = vsub.f32 %v594, %v602
  %v611 = vsub.f32 %v595, %v605
  %v612 = vsub.f32 %v596, %v608
  %v613 = vmul.f32 %v609, 1.442695
  %v614 = vpow.pop %v613
  %v615 = vmul.f32 %v610, 1.442695
  %v616 = vpow.pop %v615
  %v617 = vmul.f32 %v611, 1.442695
  %v618 = vpow.pop %v617
  %v619 = vmul.f32 %v612, 1.442695
  %v620 = vpow.pop %v619
  %v621 = vsel %vm343, %v614, 0.0
  %622 = vadd.xlane.f32.xlu0 %v621
  %v623 = vpop.xlane.xlu0 %622
  %v624 = vsel %vm343, %v616, 0.0
  %625 = vadd.xlane.f32.xlu0 %v624
  %v626 = vpop.xlane.xlu0 %625
  %v627 = vsel %vm343, %v618, 0.0
  %628 = vadd.xlane.f32.xlu0 %v627
  %v629 = vpop.xlane.xlu0 %628
  %v630 = vsel %vm343, %v620, 0.0
  %631 = vadd.xlane.f32.xlu0 %v630
  %v632 = vpop.xlane.xlu0 %631
  %v633 = vrcp.pop %v623
  %v634 = vrcp.pop %v626
  %v635 = vrcp.pop %v629
  %v636 = vrcp.pop %v632
  %v637 = vmul.f32 %v614, %v633
  %v638 = vmul.f32 %v616, %v634
  %v639 = vmul.f32 %v618, %v635
  %v640 = vmul.f32 %v620, %v636
  %v641 = vpack.c.bf16 %v638, %v637
  %v642 = vpack.c.bf16 %v640, %v639
  %643 = vrot.lane.b32.xlu0 %v220, 56
  %v644 = vpop.permute.xlu0 %643
  %v647 = vsel %vm343, %v641, 0
  %649 = vmatprep.subr.bf16.mxu0 0
  %650 = vmatpush1.bf16.msra.mxu0 %v644
  %651 = vmatprep.subr.bf16.mxu0 0
  %652 = vmatpush1.bf16.msra.mxu0 0
  %653 = vmatprep.subr.bf16.mxu0 0
  %654 = vmatpush1.bf16.msra.mxu0 0
  %655 = vmatprep.subr.bf16.mxu0 0
  %656 = vmatpush1.bf16.msra.mxu0 0
  %657 = vmatprep.subr.bf16.mxu0 0
  %658 = vmatpush1.bf16.msra.mxu0 0
  %659 = vmatprep.subr.bf16.mxu0 0
  %660 = vmatpush1.bf16.msra.mxu0 0
  %661 = vmatprep.subr.bf16.mxu0 0
  %662 = vmatpush1.bf16.msra.mxu0 0
  %663 = vmatprep.subr.bf16.mxu0 0
  %664 = vmatpush1.bf16.msra.mxu0 0
  %665 = vmatprep.subr.bf16.mxu0 0
  %666 = vmatpush1.bf16.msra.mxu0 0
  %667 = vmatprep.subr.bf16.mxu0 0
  %668 = vmatpush1.bf16.msra.mxu0 0
  %669 = vmatprep.subr.bf16.mxu0 0
  %670 = vmatpush1.bf16.msra.mxu0 0
  %671 = vmatprep.subr.bf16.mxu0 0
  %672 = vmatpush1.bf16.msra.mxu0 0
  %673 = vmatprep.subr.bf16.mxu0 0
  %674 = vmatpush1.bf16.msra.mxu0 0
  %675 = vmatprep.subr.bf16.mxu0 0
  %676 = vmatpush1.bf16.msra.mxu0 0
  %677 = vmatprep.subr.bf16.mxu0 0
  %678 = vmatpush1.bf16.msra.mxu0 0
  %679 = vmatprep.subr.bf16.mxu0 0
  %680 = vmatpush1.bf16.msra.mxu0 0
  %681 = vmatprep.mubr.bf16.mxu0 0
  %682 = vmatmul.mubr.bf16.gmra.mrb[0].mxu0 %v647
  %v683 = vpop.f32.mrb[0].mxu0
  %v684 = vadd.f32 0.0, %v683
  %v685 = vpop.f32.mrb[0].mxu0
  %v686 = vpop.f32.mrb[0].mxu0
  %v687 = vadd.f32 0.0, %v686
  %v688 = vpop.f32.mrb[0].mxu0
  %689 = vdwg.mxu0
  %690 = vrot.lane.b32.xlu0 %v221, 56
  %v691 = vpop.permute.xlu0 %690
  %v694 = vsel %vm343, %v642, 0
  %696 = vmatprep.subr.bf16.mxu0 0
  %697 = vmatpush1.bf16.msra.mxu0 %v691
  %698 = vmatprep.subr.bf16.mxu0 0
  %699 = vmatpush1.bf16.msra.mxu0 0
  %700 = vmatprep.subr.bf16.mxu0 0
  %701 = vmatpush1.bf16.msra.mxu0 0
  %702 = vmatprep.subr.bf16.mxu0 0
  %703 = vmatpush1.bf16.msra.mxu0 0
  %704 = vmatprep.subr.bf16.mxu0 0
  %705 = vmatpush1.bf16.msra.mxu0 0
  %706 = vmatprep.subr.bf16.mxu0 0
  %707 = vmatpush1.bf16.msra.mxu0 0
  %708 = vmatprep.subr.bf16.mxu0 0
  %709 = vmatpush1.bf16.msra.mxu0 0
  %710 = vmatprep.subr.bf16.mxu0 0
  %711 = vmatpush1.bf16.msra.mxu0 0
  %712 = vmatprep.subr.bf16.mxu0 0
  %713 = vmatpush1.bf16.msra.mxu0 0
  %714 = vmatprep.subr.bf16.mxu0 0
  %715 = vmatpush1.bf16.msra.mxu0 0
  %716 = vmatprep.subr.bf16.mxu0 0
  %717 = vmatpush1.bf16.msra.mxu0 0
  %718 = vmatprep.subr.bf16.mxu0 0
  %719 = vmatpush1.bf16.msra.mxu0 0
  %720 = vmatprep.subr.bf16.mxu0 0
  %721 = vmatpush1.bf16.msra.mxu0 0
  %722 = vmatprep.subr.bf16.mxu0 0
  %723 = vmatpush1.bf16.msra.mxu0 0
  %724 = vmatprep.subr.bf16.mxu0 0
  %725 = vmatpush1.bf16.msra.mxu0 0
  %726 = vmatprep.subr.bf16.mxu0 0
  %727 = vmatpush1.bf16.msra.mxu0 0
  %728 = vmatprep.mubr.bf16.mxu0 0
  %729 = vmatmul.mubr.bf16.gmra.mrb[0].mxu0 %v694
  %v730 = vpop.f32.mrb[0].mxu0
  %v731 = vadd.f32 0.0, %v730
  %v732 = vpop.f32.mrb[0].mxu0
  %v733 = vpop.f32.mrb[0].mxu0
  %v734 = vadd.f32 0.0, %v733
  %v735 = vpop.f32.mrb[0].mxu0
  %736 = vdwg.mxu0
  %v737 = vpack.c.bf16 %v687, %v684
  %v738 = vpack.c.bf16 %v734, %v731
  %s739 = scalar_lea.vmem %s6, 4
  %v740 = vld [vmem:[%s739] sm:$0xf]
  %v742 = vsel %vm225, %v737, 0
  %v745 = vsel %vm225, %v738, 0
  %vm747 = vcmask 1043456
  %v749 = vsel %vm747, %v740, 0
  %751 = vmatprep.subr.bf16.mxu0 0
  %752 = vmatpush1.bf16.msra.mxu0 %v749
  %753 = vmatprep.subr.bf16.mxu0 0
  %754 = vmatpush1.bf16.msra.mxu0 0
  %755 = vmatprep.subr.bf16.mxu0 0
  %756 = vmatpush1.bf16.msra.mxu0 0
  %757 = vmatprep.subr.bf16.mxu0 0
  %758 = vmatpush1.bf16.msra.mxu0 0
  %759 = vmatprep.subr.bf16.mxu0 0
  %760 = vmatpush1.bf16.msra.mxu0 0
  %761 = vmatprep.subr.bf16.mxu0 0
  %762 = vmatpush1.bf16.msra.mxu0 0
  %763 = vmatprep.subr.bf16.mxu0 0
  %764 = vmatpush1.bf16.msra.mxu0 0
  %765 = vmatprep.subr.bf16.mxu0 0
  %766 = vmatpush1.bf16.msra.mxu0 0
  %767 = vmatprep.subr.bf16.mxu0 0
  %768 = vmatpush1.bf16.msra.mxu0 0
  %769 = vmatprep.subr.bf16.mxu0 0
  %770 = vmatpush1.bf16.msra.mxu0 0
  %771 = vmatprep.subr.bf16.mxu0 0
  %772 = vmatpush1.bf16.msra.mxu0 0
  %773 = vmatprep.subr.bf16.mxu0 0
  %774 = vmatpush1.bf16.msra.mxu0 0
  %775 = vmatprep.subr.bf16.mxu0 0
  %776 = vmatpush1.bf16.msra.mxu0 0
  %777 = vmatprep.subr.bf16.mxu0 0
  %778 = vmatpush1.bf16.msra.mxu0 0
  %779 = vmatprep.subr.bf16.mxu0 0
  %780 = vmatpush1.bf16.msra.mxu0 0
  %781 = vmatprep.subr.bf16.mxu0 0
  %782 = vmatpush1.bf16.msra.mxu0 0
  %783 = vmatprep.mubr.bf16.mxu0 0
  %784 = vmatmul.mubr.bf16.gmra.mrb[0].mxu0 %v742
  %v785 = vpop.f32.mrb[0].mxu0
  %v786 = vadd.f32 0.0, %v785
  %v787 = vpop.f32.mrb[0].mxu0
  %v788 = vpop.f32.mrb[0].mxu0
  %v789 = vadd.f32 0.0, %v788
  %v790 = vpop.f32.mrb[0].mxu0
  %791 = vmatprep.mubr.bf16.mxu0 0
  %792 = vmatmul.mubr.bf16.gmra.mrb[0].mxu0 %v745
  %v793 = vpop.f32.mrb[0].mxu0
  %v794 = vadd.f32 0.0, %v793
  %v795 = vpop.f32.mrb[0].mxu0
  %v796 = vpop.f32.mrb[0].mxu0
  %v797 = vadd.f32 0.0, %v796
  %v798 = vpop.f32.mrb[0].mxu0
  %799 = vdwg.mxu0
  %v801 = vsel %vm225, %v484, 0
  %v804 = vsel %vm225, %v485, 0
  %v807 = vsel %vm747, %v486, 0
  %809 = vmatprep.subr.bf16.mxu0 0
  %810 = vmatpush1.bf16.msra.mxu0 %v807
  %811 = vmatprep.subr.bf16.mxu0 0
  %812 = vmatpush1.bf16.msra.mxu0 0
  %813 = vmatprep.subr.bf16.mxu0 0
  %814 = vmatpush1.bf16.msra.mxu0 0
  %815 = vmatprep.subr.bf16.mxu0 0
  %816 = vmatpush1.bf16.msra.mxu0 0
  %817 = vmatprep.subr.bf16.mxu0 0
  %818 = vmatpush1.bf16.msra.mxu0 0
  %819 = vmatprep.subr.bf16.mxu0 0
  %820 = vmatpush1.bf16.msra.mxu0 0
  %821 = vmatprep.subr.bf16.mxu0 0
  %822 = vmatpush1.bf16.msra.mxu0 0
  %823 = vmatprep.subr.bf16.mxu0 0
  %824 = vmatpush1.bf16.msra.mxu0 0
  %825 = vmatprep.subr.bf16.mxu0 0
  %826 = vmatpush1.bf16.msra.mxu0 0
  %827 = vmatprep.subr.bf16.mxu0 0
  %828 = vmatpush1.bf16.msra.mxu0 0
  %829 = vmatprep.subr.bf16.mxu0 0
  %830 = vmatpush1.bf16.msra.mxu0 0
  %831 = vmatprep.subr.bf16.mxu0 0
  %832 = vmatpush1.bf16.msra.mxu0 0
  %833 = vmatprep.subr.bf16.mxu0 0
  %834 = vmatpush1.bf16.msra.mxu0 0
  %835 = vmatprep.subr.bf16.mxu0 0
  %836 = vmatpush1.bf16.msra.mxu0 0
  %837 = vmatprep.subr.bf16.mxu0 0
  %838 = vmatpush1.bf16.msra.mxu0 0
  %839 = vmatprep.subr.bf16.mxu0 0
  %840 = vmatpush1.bf16.msra.mxu0 0
  %841 = vmatprep.mubr.bf16.mxu0 0
  %842 = vmatmul.mubr.bf16.gmra.mrb[0].mxu0 %v801
  %v843 = vpop.f32.mrb[0].mxu0
  %v844 = vadd.f32 %v786, %v843
  %v845 = vpop.f32.mrb[0].mxu0
  %v846 = vpop.f32.mrb[0].mxu0
  %v847 = vadd.f32 %v789, %v846
  %v848 = vpop.f32.mrb[0].mxu0
  %849 = vmatprep.mubr.bf16.mxu0 0
  %850 = vmatmul.mubr.bf16.gmra.mrb[0].mxu0 %v804
  %v851 = vpop.f32.mrb[0].mxu0
  %v852 = vadd.f32 %v794, %v851
  %v853 = vpop.f32.mrb[0].mxu0
  %v854 = vpop.f32.mrb[0].mxu0
  %v855 = vadd.f32 %v797, %v854
  %v856 = vpop.f32.mrb[0].mxu0
  %857 = vdwg.mxu0
  %858 = vrot.lane.b32.xlu0 %v220, 112
  %v859 = vpop.permute.xlu0 %858
  %860 = vrot.lane.b32.xlu0 %v220, 80
  %v861 = vpop.permute.xlu0 %860
  %v863 = vsel %vm225, %v859, 0
  %v866 = vsel %vm225, %v861, 0
  %868 = vmatprep.subr.bf16.mxu0 0
  %869 = vmatpush1.bf16.xpose.msra.mxu0 %v866
  %870 = vmatprep.subr.bf16.mxu0 0
  %871 = vmatpush1.bf16.xpose.msra.mxu0 0
  %872 = vmatprep.subr.bf16.mxu0 0
  %873 = vmatpush1.bf16.xpose.msra.mxu0 0
  %874 = vmatprep.subr.bf16.mxu0 0
  %875 = vmatpush1.bf16.xpose.msra.mxu0 0
  %876 = vmatprep.subr.bf16.mxu0 0
  %877 = vmatpush1.bf16.xpose.msra.mxu0 0
  %878 = vmatprep.subr.bf16.mxu0 0
  %879 = vmatpush1.bf16.xpose.msra.mxu0 0
  %880 = vmatprep.subr.bf16.mxu0 0
  %881 = vmatpush1.bf16.xpose.msra.mxu0 0
  %882 = vmatprep.subr.bf16.mxu0 0
  %883 = vmatpush1.bf16.xpose.msra.mxu0 0
  %884 = vmatprep.subr.bf16.mxu0 0
  %885 = vmatpush1.bf16.xpose.msra.mxu0 0
  %886 = vmatprep.subr.bf16.mxu0 0
  %887 = vmatpush1.bf16.xpose.msra.mxu0 0
  %888 = vmatprep.subr.bf16.mxu0 0
  %889 = vmatpush1.bf16.xpose.msra.mxu0 0
  %890 = vmatprep.subr.bf16.mxu0 0
  %891 = vmatpush1.bf16.xpose.msra.mxu0 0
  %892 = vmatprep.subr.bf16.mxu0 0
  %893 = vmatpush1.bf16.xpose.msra.mxu0 0
  %894 = vmatprep.subr.bf16.mxu0 0
  %895 = vmatpush1.bf16.xpose.msra.mxu0 0
  %896 = vmatprep.subr.bf16.mxu0 0
  %897 = vmatpush1.bf16.xpose.msra.mxu0 0
  %898 = vmatprep.subr.bf16.mxu0 0
  %899 = vmatpush1.bf16.xpose.msra.mxu0 0
  %900 = vmatprep.mubr.bf16.mxu0 0
  %901 = vmatmul.mubr.bf16.gmra.mrb[0].mxu0 %v863
  %v902 = vpop.f32.mrb[0].mxu0
  %v903 = vadd.f32 0.0, %v902
  %v904 = vpop.f32.mrb[0].mxu0
  %v905 = vpop.f32.mrb[0].mxu0
  %v906 = vadd.f32 0.0, %v905
  %v907 = vpop.f32.mrb[0].mxu0
  %908 = vdwg.mxu0
  %909 = vrot.lane.b32.xlu0 %v221, 112
  %v910 = vpop.permute.xlu0 %909
  %911 = vrot.lane.b32.xlu0 %v221, 80
  %v912 = vpop.permute.xlu0 %911
  %v914 = vsel %vm225, %v910, 0
  %v917 = vsel %vm225, %v912, 0
  %919 = vmatprep.subr.bf16.mxu0 0
  %920 = vmatpush1.bf16.xpose.msra.mxu0 %v917
  %921 = vmatprep.subr.bf16.mxu0 0
  %922 = vmatpush1.bf16.xpose.msra.mxu0 0
  %923 = vmatprep.subr.bf16.mxu0 0
  %924 = vmatpush1.bf16.xpose.msra.mxu0 0
  %925 = vmatprep.subr.bf16.mxu0 0
  %926 = vmatpush1.bf16.xpose.msra.mxu0 0
  %927 = vmatprep.subr.bf16.mxu0 0
  %928 = vmatpush1.bf16.xpose.msra.mxu0 0
  %929 = vmatprep.subr.bf16.mxu0 0
  %930 = vmatpush1.bf16.xpose.msra.mxu0 0
  %931 = vmatprep.subr.bf16.mxu0 0
  %932 = vmatpush1.bf16.xpose.msra.mxu0 0
  %933 = vmatprep.subr.bf16.mxu0 0
  %934 = vmatpush1.bf16.xpose.msra.mxu0 0
  %935 = vmatprep.subr.bf16.mxu0 0
  %936 = vmatpush1.bf16.xpose.msra.mxu0 0
  %937 = vmatprep.subr.bf16.mxu0 0
  %938 = vmatpush1.bf16.xpose.msra.mxu0 0
  %939 = vmatprep.subr.bf16.mxu0 0
  %940 = vmatpush1.bf16.xpose.msra.mxu0 0
  %941 = vmatprep.subr.bf16.mxu0 0
  %942 = vmatpush1.bf16.xpose.msra.mxu0 0
  %943 = vmatprep.subr.bf16.mxu0 0
  %944 = vmatpush1.bf16.xpose.msra.mxu0 0
  %945 = vmatprep.subr.bf16.mxu0 0
  %946 = vmatpush1.bf16.xpose.msra.mxu0 0
  %947 = vmatprep.subr.bf16.mxu0 0
  %948 = vmatpush1.bf16.xpose.msra.mxu0 0
  %949 = vmatprep.subr.bf16.mxu0 0
  %950 = vmatpush1.bf16.xpose.msra.mxu0 0
  %951 = vmatprep.mubr.bf16.mxu0 0
  %952 = vmatmul.mubr.bf16.gmra.mrb[0].mxu0 %v914
  %v953 = vpop.f32.mrb[0].mxu0
  %v954 = vadd.f32 0.0, %v953
  %v955 = vpop.f32.mrb[0].mxu0
  %v956 = vpop.f32.mrb[0].mxu0
  %v957 = vadd.f32 0.0, %v956
  %v958 = vpop.f32.mrb[0].mxu0
  %959 = vdwg.mxu0
  %v960 = vmul.f32 %v903, 0.35355338
  %v961 = vmul.f32 %v906, 0.35355338
  %v962 = vmul.f32 %v954, 0.35355338
  %v963 = vmul.f32 %v957, 0.35355338
  %v964 = vadd.f32 %v960, %v332
  %v965 = vadd.f32 %v961, %v332
  %v966 = vadd.f32 %v962, %v336
  %v967 = vadd.f32 %v963, %v336
  %v968 = vsel %vm343, %v964, -inf
  %969 = vmax.xlane.f32.xlu0 %v968
  %v970 = vpop.xlane.xlu0 %969
  %v971 = vsel %vm343, %v965, -inf
  %972 = vmax.xlane.f32.xlu0 %v971
  %v973 = vpop.xlane.xlu0 %972
  %v974 = vsel %vm343, %v966, -inf
  %975 = vmax.xlane.f32.xlu0 %v974
  %v976 = vpop.xlane.xlu0 %975
  %v977 = vsel %vm343, %v967, -inf
  %978 = vmax.xlane.f32.xlu0 %v977
  %v979 = vpop.xlane.xlu0 %978
  %v980 = vsub.f32 %v964, %v970
  %v981 = vsub.f32 %v965, %v973
  %v982 = vsub.f32 %v966, %v976
  %v983 = vsub.f32 %v967, %v979
  %v984 = vmul.f32 %v980, 1.442695
  %v985 = vpow.pop %v984
  %v986 = vmul.f32 %v981, 1.442695
  %v987 = vpow.pop %v986
  %v988 = vmul.f32 %v982, 1.442695
  %v989 = vpow.pop %v988
  %v990 = vmul.f32 %v983, 1.442695
  %v991 = vpow.pop %v990
  %v992 = vsel %vm343, %v985, 0.0
  %993 = vadd.xlane.f32.xlu0 %v992
  %v994 = vpop.xlane.xlu0 %993
  %v995 = vsel %vm343, %v987, 0.0
  %996 = vadd.xlane.f32.xlu0 %v995
  %v997 = vpop.xlane.xlu0 %996
  %v998 = vsel %vm343, %v989, 0.0
  %999 = vadd.xlane.f32.xlu0 %v998
  %v1000 = vpop.xlane.xlu0 %999
  %v1001 = vsel %vm343, %v991, 0.0
  %1002 = vadd.xlane.f32.xlu0 %v1001
  %v1003 = vpop.xlane.xlu0 %1002
  %v1004 = vrcp.pop %v994
  %v1005 = vrcp.pop %v997
  %v1006 = vrcp.pop %v1000
  %v1007 = vrcp.pop %v1003
  %v1008 = vmul.f32 %v985, %v1004
  %v1009 = vmul.f32 %v987, %v1005
  %v1010 = vmul.f32 %v989, %v1006
  %v1011 = vmul.f32 %v991, %v1007
  %v1012 = vpack.c.bf16 %v1009, %v1008
  %v1013 = vpack.c.bf16 %v1011, %v1010
  %1014 = vrot.lane.b32.xlu0 %v220, 48
  %v1015 = vpop.permute.xlu0 %1014
  %v1018 = vsel %vm343, %v1012, 0
  %1020 = vmatprep.subr.bf16.mxu0 0
  %1021 = vmatpush1.bf16.msra.mxu0 %v1015
  %1022 = vmatprep.subr.bf16.mxu0 0
  %1023 = vmatpush1.bf16.msra.mxu0 0
  %1024 = vmatprep.subr.bf16.mxu0 0
  %1025 = vmatpush1.bf16.msra.mxu0 0
  %1026 = vmatprep.subr.bf16.mxu0 0
  %1027 = vmatpush1.bf16.msra.mxu0 0
  %1028 = vmatprep.subr.bf16.mxu0 0
  %1029 = vmatpush1.bf16.msra.mxu0 0
  %1030 = vmatprep.subr.bf16.mxu0 0
  %1031 = vmatpush1.bf16.msra.mxu0 0
  %1032 = vmatprep.subr.bf16.mxu0 0
  %1033 = vmatpush1.bf16.msra.mxu0 0
  %1034 = vmatprep.subr.bf16.mxu0 0
  %1035 = vmatpush1.bf16.msra.mxu0 0
  %1036 = vmatprep.subr.bf16.mxu0 0
  %1037 = vmatpush1.bf16.msra.mxu0 0
  %1038 = vmatprep.subr.bf16.mxu0 0
  %1039 = vmatpush1.bf16.msra.mxu0 0
  %1040 = vmatprep.subr.bf16.mxu0 0
  %1041 = vmatpush1.bf16.msra.mxu0 0
  %1042 = vmatprep.subr.bf16.mxu0 0
  %1043 = vmatpush1.bf16.msra.mxu0 0
  %1044 = vmatprep.subr.bf16.mxu0 0
  %1045 = vmatpush1.bf16.msra.mxu0 0
  %1046 = vmatprep.subr.bf16.mxu0 0
  %1047 = vmatpush1.bf16.msra.mxu0 0
  %1048 = vmatprep.subr.bf16.mxu0 0
  %1049 = vmatpush1.bf16.msra.mxu0 0
  %1050 = vmatprep.subr.bf16.mxu0 0
  %1051 = vmatpush1.bf16.msra.mxu0 0
  %1052 = vmatprep.mubr.bf16.mxu0 0
  %1053 = vmatmul.mubr.bf16.gmra.mrb[0].mxu0 %v1018
  %v1054 = vpop.f32.mrb[0].mxu0
  %v1055 = vadd.f32 0.0, %v1054
  %v1056 = vpop.f32.mrb[0].mxu0
  %v1057 = vpop.f32.mrb[0].mxu0
  %v1058 = vadd.f32 0.0, %v1057
  %v1059 = vpop.f32.mrb[0].mxu0
  %1060 = vdwg.mxu0
  %1061 = vrot.lane.b32.xlu0 %v221, 48
  %v1062 = vpop.permute.xlu0 %1061
  %v1065 = vsel %vm343, %v1013, 0
  %1067 = vmatprep.subr.bf16.mxu0 0
  %1068 = vmatpush1.bf16.msra.mxu0 %v1062
  %1069 = vmatprep.subr.bf16.mxu0 0
  %1070 = vmatpush1.bf16.msra.mxu0 0
  %1071 = vmatprep.subr.bf16.mxu0 0
  %1072 = vmatpush1.bf16.msra.mxu0 0
  %1073 = vmatprep.subr.bf16.mxu0 0
  %1074 = vmatpush1.bf16.msra.mxu0 0
  %1075 = vmatprep.subr.bf16.mxu0 0
  %1076 = vmatpush1.bf16.msra.mxu0 0
  %1077 = vmatprep.subr.bf16.mxu0 0
  %1078 = vmatpush1.bf16.msra.mxu0 0
  %1079 = vmatprep.subr.bf16.mxu0 0
  %1080 = vmatpush1.bf16.msra.mxu0 0
  %1081 = vmatprep.subr.bf16.mxu0 0
  %1082 = vmatpush1.bf16.msra.mxu0 0
  %1083 = vmatprep.subr.bf16.mxu0 0
  %1084 = vmatpush1.bf16.msra.mxu0 0
  %1085 = vmatprep.subr.bf16.mxu0 0
  %1086 = vmatpush1.bf16.msra.mxu0 0
  %1087 = vmatprep.subr.bf16.mxu0 0
  %1088 = vmatpush1.bf16.msra.mxu0 0
  %1089 = vmatprep.subr.bf16.mxu0 0
  %1090 = vmatpush1.bf16.msra.mxu0 0
  %1091 = vmatprep.subr.bf16.mxu0 0
  %1092 = vmatpush1.bf16.msra.mxu0 0
  %1093 = vmatprep.subr.bf16.mxu0 0
  %1094 = vmatpush1.bf16.msra.mxu0 0
  %1095 = vmatprep.subr.bf16.mxu0 0
  %1096 = vmatpush1.bf16.msra.mxu0 0
  %1097 = vmatprep.subr.bf16.mxu0 0
  %1098 = vmatpush1.bf16.msra.mxu0 0
  %1099 = vmatprep.mubr.bf16.mxu0 0
  %1100 = vmatmul.mubr.bf16.gmra.mrb[0].mxu0 %v1065
  %v1101 = vpop.f32.mrb[0].mxu0
  %v1102 = vadd.f32 0.0, %v1101
  %v1103 = vpop.f32.mrb[0].mxu0
  %v1104 = vpop.f32.mrb[0].mxu0
  %v1105 = vadd.f32 0.0, %v1104
  %v1106 = vpop.f32.mrb[0].mxu0
  %1107 = vdwg.mxu0
  %v1108 = vpack.c.bf16 %v1058, %v1055
  %v1109 = vpack.c.bf16 %v1105, %v1102
  %s1110 = scalar_lea.vmem %s6, 8
  %v1111 = vld [vmem:[%s1110] sm:$0xf]
  %v1113 = vsel %vm225, %v1108, 0
  %v1116 = vsel %vm225, %v1109, 0
  %v1119 = vsel %vm747, %v1111, 0
  %1121 = vmatprep.subr.bf16.mxu0 0
  %1122 = vmatpush1.bf16.msra.mxu0 %v1119
  %1123 = vmatprep.subr.bf16.mxu0 0
  %1124 = vmatpush1.bf16.msra.mxu0 0
  %1125 = vmatprep.subr.bf16.mxu0 0
  %1126 = vmatpush1.bf16.msra.mxu0 0
  %1127 = vmatprep.subr.bf16.mxu0 0
  %1128 = vmatpush1.bf16.msra.mxu0 0
  %1129 = vmatprep.subr.bf16.mxu0 0
  %1130 = vmatpush1.bf16.msra.mxu0 0
  %1131 = vmatprep.subr.bf16.mxu0 0
  %1132 = vmatpush1.bf16.msra.mxu0 0
  %1133 = vmatprep.subr.bf16.mxu0 0
  %1134 = vmatpush1.bf16.msra.mxu0 0
  %1135 = vmatprep.subr.bf16.mxu0 0
  %1136 = vmatpush1.bf16.msra.mxu0 0
  %1137 = vmatprep.subr.bf16.mxu0 0
  %1138 = vmatpush1.bf16.msra.mxu0 0
  %1139 = vmatprep.subr.bf16.mxu0 0
  %1140 = vmatpush1.bf16.msra.mxu0 0
  %1141 = vmatprep.subr.bf16.mxu0 0
  %1142 = vmatpush1.bf16.msra.mxu0 0
  %1143 = vmatprep.subr.bf16.mxu0 0
  %1144 = vmatpush1.bf16.msra.mxu0 0
  %1145 = vmatprep.subr.bf16.mxu0 0
  %1146 = vmatpush1.bf16.msra.mxu0 0
  %1147 = vmatprep.subr.bf16.mxu0 0
  %1148 = vmatpush1.bf16.msra.mxu0 0
  %1149 = vmatprep.subr.bf16.mxu0 0
  %1150 = vmatpush1.bf16.msra.mxu0 0
  %1151 = vmatprep.subr.bf16.mxu0 0
  %1152 = vmatpush1.bf16.msra.mxu0 0
  %1153 = vmatprep.mubr.bf16.mxu0 0
  %1154 = vmatmul.mubr.bf16.gmra.mrb[0].mxu0 %v1113
  %v1155 = vpop.f32.mrb[0].mxu0
  %v1156 = vadd.f32 0.0, %v1155
  %v1157 = vpop.f32.mrb[0].mxu0
  %v1158 = vpop.f32.mrb[0].mxu0
  %v1159 = vadd.f32 0.0, %v1158
  %v1160 = vpop.f32.mrb[0].mxu0
  %1161 = vmatprep.mubr.bf16.mxu0 0
  %1162 = vmatmul.mubr.bf16.gmra.mrb[0].mxu0 %v1116
  %v1163 = vpop.f32.mrb[0].mxu0
  %v1164 = vadd.f32 0.0, %v1163
  %v1165 = vpop.f32.mrb[0].mxu0
  %v1166 = vpop.f32.mrb[0].mxu0
  %v1167 = vadd.f32 0.0, %v1166
  %v1168 = vpop.f32.mrb[0].mxu0
  %1169 = vdwg.mxu0
  %v1170 = vadd.f32 %v844, %v1156
  %v1171 = vadd.f32 %v847, %v1159
  %v1172 = vadd.f32 %v852, %v1164
  %v1173 = vadd.f32 %v855, %v1167
  %1174 = vrot.lane.b32.xlu0 %v220, 104
  %v1175 = vpop.permute.xlu0 %1174
  %1176 = vrot.lane.b32.xlu0 %v220, 72
  %v1177 = vpop.permute.xlu0 %1176
  %v1179 = vsel %vm225, %v1175, 0
  %v1182 = vsel %vm225, %v1177, 0
  %1184 = vmatprep.subr.bf16.mxu0 0
  %1185 = vmatpush1.bf16.xpose.msra.mxu0 %v1182
  %1186 = vmatprep.subr.bf16.mxu0 0
  %1187 = vmatpush1.bf16.xpose.msra.mxu0 0
  %1188 = vmatprep.subr.bf16.mxu0 0
  %1189 = vmatpush1.bf16.xpose.msra.mxu0 0
  %1190 = vmatprep.subr.bf16.mxu0 0
  %1191 = vmatpush1.bf16.xpose.msra.mxu0 0
  %1192 = vmatprep.subr.bf16.mxu0 0
  %1193 = vmatpush1.bf16.xpose.msra.mxu0 0
  %1194 = vmatprep.subr.bf16.mxu0 0
  %1195 = vmatpush1.bf16.xpose.msra.mxu0 0
  %1196 = vmatprep.subr.bf16.mxu0 0
  %1197 = vmatpush1.bf16.xpose.msra.mxu0 0
  %1198 = vmatprep.subr.bf16.mxu0 0
  %1199 = vmatpush1.bf16.xpose.msra.mxu0 0
  %1200 = vmatprep.subr.bf16.mxu0 0
  %1201 = vmatpush1.bf16.xpose.msra.mxu0 0
  %1202 = vmatprep.subr.bf16.mxu0 0
  %1203 = vmatpush1.bf16.xpose.msra.mxu0 0
  %1204 = vmatprep.subr.bf16.mxu0 0
  %1205 = vmatpush1.bf16.xpose.msra.mxu0 0
  %1206 = vmatprep.subr.bf16.mxu0 0
  %1207 = vmatpush1.bf16.xpose.msra.mxu0 0
  %1208 = vmatprep.subr.bf16.mxu0 0
  %1209 = vmatpush1.bf16.xpose.msra.mxu0 0
  %1210 = vmatprep.subr.bf16.mxu0 0
  %1211 = vmatpush1.bf16.xpose.msra.mxu0 0
  %1212 = vmatprep.subr.bf16.mxu0 0
  %1213 = vmatpush1.bf16.xpose.msra.mxu0 0
  %1214 = vmatprep.subr.bf16.mxu0 0
  %1215 = vmatpush1.bf16.xpose.msra.mxu0 0
  %1216 = vmatprep.mubr.bf16.mxu0 0
  %1217 = vmatmul.mubr.bf16.gmra.mrb[0].mxu0 %v1179
  %v1218 = vpop.f32.mrb[0].mxu0
  %v1219 = vadd.f32 0.0, %v1218
  %v1220 = vpop.f32.mrb[0].mxu0
  %v1221 = vpop.f32.mrb[0].mxu0
  %v1222 = vadd.f32 0.0, %v1221
  %v1223 = vpop.f32.mrb[0].mxu0
  %1224 = vdwg.mxu0
  %1225 = vrot.lane.b32.xlu0 %v221, 104
  %v1226 = vpop.permute.xlu0 %1225
  %1227 = vrot.lane.b32.xlu0 %v221, 72
  %v1228 = vpop.permute.xlu0 %1227
  %v1230 = vsel %vm225, %v1226, 0
  %v1233 = vsel %vm225, %v1228, 0
  %1235 = vmatprep.subr.bf16.mxu0 0
  %1236 = vmatpush1.bf16.xpose.msra.mxu0 %v1233
  %1237 = vmatprep.subr.bf16.mxu0 0
  %1238 = vmatpush1.bf16.xpose.msra.mxu0 0
  %1239 = vmatprep.subr.bf16.mxu0 0
  %1240 = vmatpush1.bf16.xpose.msra.mxu0 0
  %1241 = vmatprep.subr.bf16.mxu0 0
  %1242 = vmatpush1.bf16.xpose.msra.mxu0 0
  %1243 = vmatprep.subr.bf16.mxu0 0
  %1244 = vmatpush1.bf16.xpose.msra.mxu0 0
  %1245 = vmatprep.subr.bf16.mxu0 0
  %1246 = vmatpush1.bf16.xpose.msra.mxu0 0
  %1247 = vmatprep.subr.bf16.mxu0 0
  %1248 = vmatpush1.bf16.xpose.msra.mxu0 0
  %1249 = vmatprep.subr.bf16.mxu0 0
  %1250 = vmatpush1.bf16.xpose.msra.mxu0 0
  %1251 = vmatprep.subr.bf16.mxu0 0
  %1252 = vmatpush1.bf16.xpose.msra.mxu0 0
  %1253 = vmatprep.subr.bf16.mxu0 0
  %1254 = vmatpush1.bf16.xpose.msra.mxu0 0
  %1255 = vmatprep.subr.bf16.mxu0 0
  %1256 = vmatpush1.bf16.xpose.msra.mxu0 0
  %1257 = vmatprep.subr.bf16.mxu0 0
  %1258 = vmatpush1.bf16.xpose.msra.mxu0 0
  %1259 = vmatprep.subr.bf16.mxu0 0
  %1260 = vmatpush1.bf16.xpose.msra.mxu0 0
  %1261 = vmatprep.subr.bf16.mxu0 0
  %1262 = vmatpush1.bf16.xpose.msra.mxu0 0
  %1263 = vmatprep.subr.bf16.mxu0 0
  %1264 = vmatpush1.bf16.xpose.msra.mxu0 0
  %1265 = vmatprep.subr.bf16.mxu0 0
  %1266 = vmatpush1.bf16.xpose.msra.mxu0 0
  %1267 = vmatprep.mubr.bf16.mxu0 0
  %1268 = vmatmul.mubr.bf16.gmra.mrb[0].mxu0 %v1230
  %v1269 = vpop.f32.mrb[0].mxu0
  %v1270 = vadd.f32 0.0, %v1269
  %v1271 = vpop.f32.mrb[0].mxu0
  %v1272 = vpop.f32.mrb[0].mxu0
  %v1273 = vadd.f32 0.0, %v1272
  %v1274 = vpop.f32.mrb[0].mxu0
  %1275 = vdwg.mxu0
  %v1276 = vmul.f32 %v1219, 0.35355338
  %v1277 = vmul.f32 %v1222, 0.35355338
  %v1278 = vmul.f32 %v1270, 0.35355338
  %v1279 = vmul.f32 %v1273, 0.35355338
  %v1280 = vadd.f32 %v1276, %v332
  %v1281 = vadd.f32 %v1277, %v332
  %v1282 = vadd.f32 %v1278, %v336
  %v1283 = vadd.f32 %v1279, %v336
  %v1284 = vsel %vm343, %v1280, -inf
  %1285 = vmax.xlane.f32.xlu0 %v1284
  %v1286 = vpop.xlane.xlu0 %1285
  %v1287 = vsel %vm343, %v1281, -inf
  %1288 = vmax.xlane.f32.xlu0 %v1287
  %v1289 = vpop.xlane.xlu0 %1288
  %v1290 = vsel %vm343, %v1282, -inf
  %1291 = vmax.xlane.f32.xlu0 %v1290
  %v1292 = vpop.xlane.xlu0 %1291
  %v1293 = vsel %vm343, %v1283, -inf
  %1294 = vmax.xlane.f32.xlu0 %v1293
  %v1295 = vpop.xlane.xlu0 %1294
  %v1296 = vsub.f32 %v1280, %v1286
  %v1297 = vsub.f32 %v1281, %v1289
  %v1298 = vsub.f32 %v1282, %v1292
  %v1299 = vsub.f32 %v1283, %v1295
  %v1300 = vmul.f32 %v1296, 1.442695
  %v1301 = vpow.pop %v1300
  %v1302 = vmul.f32 %v1297, 1.442695
  %v1303 = vpow.pop %v1302
  %v1304 = vmul.f32 %v1298, 1.442695
  %v1305 = vpow.pop %v1304
  %v1306 = vmul.f32 %v1299, 1.442695
  %v1307 = vpow.pop %v1306
  %v1308 = vsel %vm343, %v1301, 0.0
  %1309 = vadd.xlane.f32.xlu0 %v1308
  %v1310 = vpop.xlane.xlu0 %1309
  %v1311 = vsel %vm343, %v1303, 0.0
  %1312 = vadd.xlane.f32.xlu0 %v1311
  %v1313 = vpop.xlane.xlu0 %1312
  %v1314 = vsel %vm343, %v1305, 0.0
  %1315 = vadd.xlane.f32.xlu0 %v1314
  %v1316 = vpop.xlane.xlu0 %1315
  %v1317 = vsel %vm343, %v1307, 0.0
  %1318 = vadd.xlane.f32.xlu0 %v1317
  %v1319 = vpop.xlane.xlu0 %1318
  %v1320 = vrcp.pop %v1310
  %v1321 = vrcp.pop %v1313
  %v1322 = vrcp.pop %v1316
  %v1323 = vrcp.pop %v1319
  %v1324 = vmul.f32 %v1301, %v1320
  %v1325 = vmul.f32 %v1303, %v1321
  %v1326 = vmul.f32 %v1305, %v1322
  %v1327 = vmul.f32 %v1307, %v1323
  %v1328 = vpack.c.bf16 %v1325, %v1324
  %v1329 = vpack.c.bf16 %v1327, %v1326
  %1330 = vrot.lane.b32.xlu0 %v220, 40
  %v1331 = vpop.permute.xlu0 %1330
  %v1334 = vsel %vm343, %v1328, 0
  %1336 = vmatprep.subr.bf16.mxu0 0
  %1337 = vmatpush1.bf16.msra.mxu0 %v1331
  %1338 = vmatprep.subr.bf16.mxu0 0
  %1339 = vmatpush1.bf16.msra.mxu0 0
  %1340 = vmatprep.subr.bf16.mxu0 0
  %1341 = vmatpush1.bf16.msra.mxu0 0
  %1342 = vmatprep.subr.bf16.mxu0 0
  %1343 = vmatpush1.bf16.msra.mxu0 0
  %1344 = vmatprep.subr.bf16.mxu0 0
  %1345 = vmatpush1.bf16.msra.mxu0 0
  %1346 = vmatprep.subr.bf16.mxu0 0
  %1347 = vmatpush1.bf16.msra.mxu0 0
  %1348 = vmatprep.subr.bf16.mxu0 0
  %1349 = vmatpush1.bf16.msra.mxu0 0
  %1350 = vmatprep.subr.bf16.mxu0 0
  %1351 = vmatpush1.bf16.msra.mxu0 0
  %1352 = vmatprep.subr.bf16.mxu0 0
  %1353 = vmatpush1.bf16.msra.mxu0 0
  %1354 = vmatprep.subr.bf16.mxu0 0
  %1355 = vmatpush1.bf16.msra.mxu0 0
  %1356 = vmatprep.subr.bf16.mxu0 0
  %1357 = vmatpush1.bf16.msra.mxu0 0
  %1358 = vmatprep.subr.bf16.mxu0 0
  %1359 = vmatpush1.bf16.msra.mxu0 0
  %1360 = vmatprep.subr.bf16.mxu0 0
  %1361 = vmatpush1.bf16.msra.mxu0 0
  %1362 = vmatprep.subr.bf16.mxu0 0
  %1363 = vmatpush1.bf16.msra.mxu0 0
  %1364 = vmatprep.subr.bf16.mxu0 0
  %1365 = vmatpush1.bf16.msra.mxu0 0
  %1366 = vmatprep.subr.bf16.mxu0 0
  %1367 = vmatpush1.bf16.msra.mxu0 0
  %1368 = vmatprep.mubr.bf16.mxu0 0
  %1369 = vmatmul.mubr.bf16.gmra.mrb[0].mxu0 %v1334
  %v1370 = vpop.f32.mrb[0].mxu0
  %v1371 = vadd.f32 0.0, %v1370
  %v1372 = vpop.f32.mrb[0].mxu0
  %v1373 = vpop.f32.mrb[0].mxu0
  %v1374 = vadd.f32 0.0, %v1373
  %v1375 = vpop.f32.mrb[0].mxu0
  %1376 = vdwg.mxu0
  %1377 = vrot.lane.b32.xlu0 %v221, 40
  %v1378 = vpop.permute.xlu0 %1377
  %v1381 = vsel %vm343, %v1329, 0
  %1383 = vmatprep.subr.bf16.mxu0 0
  %1384 = vmatpush1.bf16.msra.mxu0 %v1378
  %1385 = vmatprep.subr.bf16.mxu0 0
  %1386 = vmatpush1.bf16.msra.mxu0 0
  %1387 = vmatprep.subr.bf16.mxu0 0
  %1388 = vmatpush1.bf16.msra.mxu0 0
  %1389 = vmatprep.subr.bf16.mxu0 0
  %1390 = vmatpush1.bf16.msra.mxu0 0
  %1391 = vmatprep.subr.bf16.mxu0 0
  %1392 = vmatpush1.bf16.msra.mxu0 0
  %1393 = vmatprep.subr.bf16.mxu0 0
  %1394 = vmatpush1.bf16.msra.mxu0 0
  %1395 = vmatprep.subr.bf16.mxu0 0
  %1396 = vmatpush1.bf16.msra.mxu0 0
  %1397 = vmatprep.subr.bf16.mxu0 0
  %1398 = vmatpush1.bf16.msra.mxu0 0
  %1399 = vmatprep.subr.bf16.mxu0 0
  %1400 = vmatpush1.bf16.msra.mxu0 0
  %1401 = vmatprep.subr.bf16.mxu0 0
  %1402 = vmatpush1.bf16.msra.mxu0 0
  %1403 = vmatprep.subr.bf16.mxu0 0
  %1404 = vmatpush1.bf16.msra.mxu0 0
  %1405 = vmatprep.subr.bf16.mxu0 0
  %1406 = vmatpush1.bf16.msra.mxu0 0
  %1407 = vmatprep.subr.bf16.mxu0 0
  %1408 = vmatpush1.bf16.msra.mxu0 0
  %1409 = vmatprep.subr.bf16.mxu0 0
  %1410 = vmatpush1.bf16.msra.mxu0 0
  %1411 = vmatprep.subr.bf16.mxu0 0
  %1412 = vmatpush1.bf16.msra.mxu0 0
  %1413 = vmatprep.subr.bf16.mxu0 0
  %1414 = vmatpush1.bf16.msra.mxu0 0
  %1415 = vmatprep.mubr.bf16.mxu0 0
  %1416 = vmatmul.mubr.bf16.gmra.mrb[0].mxu0 %v1381
  %v1417 = vpop.f32.mrb[0].mxu0
  %v1418 = vadd.f32 0.0, %v1417
  %v1419 = vpop.f32.mrb[0].mxu0
  %v1420 = vpop.f32.mrb[0].mxu0
  %v1421 = vadd.f32 0.0, %v1420
  %v1422 = vpop.f32.mrb[0].mxu0
  %1423 = vdwg.mxu0
  %v1424 = vpack.c.bf16 %v1374, %v1371
  %v1425 = vpack.c.bf16 %v1421, %v1418
  %s1426 = scalar_lea.vmem %s6, 12
  %v1427 = vld [vmem:[%s1426] sm:$0xf]
  %v1429 = vsel %vm225, %v1424, 0
  %v1432 = vsel %vm225, %v1425, 0
  %v1435 = vsel %vm747, %v1427, 0
  %1437 = vmatprep.subr.bf16.mxu0 0
  %1438 = vmatpush1.bf16.msra.mxu0 %v1435
  %1439 = vmatprep.subr.bf16.mxu0 0
  %1440 = vmatpush1.bf16.msra.mxu0 0
  %1441 = vmatprep.subr.bf16.mxu0 0
  %1442 = vmatpush1.bf16.msra.mxu0 0
  %1443 = vmatprep.subr.bf16.mxu0 0
  %1444 = vmatpush1.bf16.msra.mxu0 0
  %1445 = vmatprep.subr.bf16.mxu0 0
  %1446 = vmatpush1.bf16.msra.mxu0 0
  %1447 = vmatprep.subr.bf16.mxu0 0
  %1448 = vmatpush1.bf16.msra.mxu0 0
  %1449 = vmatprep.subr.bf16.mxu0 0
  %1450 = vmatpush1.bf16.msra.mxu0 0
  %1451 = vmatprep.subr.bf16.mxu0 0
  %1452 = vmatpush1.bf16.msra.mxu0 0
  %1453 = vmatprep.subr.bf16.mxu0 0
  %1454 = vmatpush1.bf16.msra.mxu0 0
  %1455 = vmatprep.subr.bf16.mxu0 0
  %1456 = vmatpush1.bf16.msra.mxu0 0
  %1457 = vmatprep.subr.bf16.mxu0 0
  %1458 = vmatpush1.bf16.msra.mxu0 0
  %1459 = vmatprep.subr.bf16.mxu0 0
  %1460 = vmatpush1.bf16.msra.mxu0 0
  %1461 = vmatprep.subr.bf16.mxu0 0
  %1462 = vmatpush1.bf16.msra.mxu0 0
  %1463 = vmatprep.subr.bf16.mxu0 0
  %1464 = vmatpush1.bf16.msra.mxu0 0
  %1465 = vmatprep.subr.bf16.mxu0 0
  %1466 = vmatpush1.bf16.msra.mxu0 0
  %1467 = vmatprep.subr.bf16.mxu0 0
  %1468 = vmatpush1.bf16.msra.mxu0 0
  %1469 = vmatprep.mubr.bf16.mxu0 0
  %1470 = vmatmul.mubr.bf16.gmra.mrb[0].mxu0 %v1429
  %v1471 = vpop.f32.mrb[0].mxu0
  %v1472 = vadd.f32 0.0, %v1471
  %v1473 = vpop.f32.mrb[0].mxu0
  %v1474 = vpop.f32.mrb[0].mxu0
  %v1475 = vadd.f32 0.0, %v1474
  %v1476 = vpop.f32.mrb[0].mxu0
  %1477 = vmatprep.mubr.bf16.mxu0 0
  %1478 = vmatmul.mubr.bf16.gmra.mrb[0].mxu0 %v1432
  %v1479 = vpop.f32.mrb[0].mxu0
  %v1480 = vadd.f32 0.0, %v1479
  %v1481 = vpop.f32.mrb[0].mxu0
  %v1482 = vpop.f32.mrb[0].mxu0
  %v1483 = vadd.f32 0.0, %v1482
  %v1484 = vpop.f32.mrb[0].mxu0
  %1485 = vdwg.mxu0
  %v1486 = vadd.f32 %v1170, %v1472
  %v1487 = vadd.f32 %v1171, %v1475
  %v1488 = vadd.f32 %v1172, %v1480
  %v1489 = vadd.f32 %v1173, %v1483
  %v1490 = vadd.f32 %v54, %v1486
  %v1491 = vadd.f32 %v55, %v1487
  %v1492 = vadd.f32 %v56, %v1488
  %v1493 = vadd.f32 %v57, %v1489
  %v1494 = vld [vmem:[%s7] sm:$0x1]
  %v1496 = vlaneseq
  %v1497 = vshrl.u32 %v1496, 7
  %v1498 = vsub.s32 0, %v1497
  %v1499 = vrot.slane %v1494, %v1498
  %v1501 = vadd.f32 %v1490, %v1499
  %v1502 = vadd.f32 %v1491, %v1499
  %v1503 = vadd.f32 %v1492, %v1499
  %v1504 = vadd.f32 %v1493, %v1499
  %v1505 = vld [vmem:[%s8] sm:$0x1]
  %v1506 = vld [vmem:[%s9] sm:$0x1]
  %v1507 = vsel %vm66, %v1501, 0.0
  %1508 = vadd.xlane.f32.xlu0 %v1507
  %v1509 = vpop.xlane.xlu0 %1508
  %v1510 = vsel %vm66, %v1502, 0.0
  %1511 = vadd.xlane.f32.xlu0 %v1510
  %v1512 = vpop.xlane.xlu0 %1511
  %v1513 = vsel %vm66, %v1503, 0.0
  %1514 = vadd.xlane.f32.xlu0 %v1513
  %v1515 = vpop.xlane.xlu0 %1514
  %v1516 = vsel %vm66, %v1504, 0.0
  %1517 = vadd.xlane.f32.xlu0 %v1516
  %v1518 = vpop.xlane.xlu0 %1517
  %v1519 = vmul.f32 %v1509, %v79
  %v1520 = vmul.f32 %v1512, %v79
  %v1521 = vmul.f32 %v1515, %v79
  %v1522 = vmul.f32 %v1518, %v79
  %v1523 = vsub.f32 %v1501, %v1519
  %v1524 = vsub.f32 %v1502, %v1520
  %v1525 = vsub.f32 %v1503, %v1521
  %v1526 = vsub.f32 %v1504, %v1522
  %v1527 = vmul.f32 %v1523, %v1523
  %v1528 = vmul.f32 %v1524, %v1524
  %v1529 = vmul.f32 %v1525, %v1525
  %v1530 = vmul.f32 %v1526, %v1526
  %v1531 = vsel %vm66, %v1527, 0.0
  %1532 = vadd.xlane.f32.xlu0 %v1531
  %v1533 = vpop.xlane.xlu0 %1532
  %v1534 = vsel %vm66, %v1528, 0.0
  %1535 = vadd.xlane.f32.xlu0 %v1534
  %v1536 = vpop.xlane.xlu0 %1535
  %v1537 = vsel %vm66, %v1529, 0.0
  %1538 = vadd.xlane.f32.xlu0 %v1537
  %v1539 = vpop.xlane.xlu0 %1538
  %v1540 = vsel %vm66, %v1530, 0.0
  %1541 = vadd.xlane.f32.xlu0 %v1540
  %v1542 = vpop.xlane.xlu0 %1541
  %v1543 = vmul.f32 %v1533, %v79
  %v1544 = vmul.f32 %v1536, %v79
  %v1545 = vmul.f32 %v1539, %v79
  %v1546 = vmul.f32 %v1542, %v79
  %v1547 = vadd.f32 %v1543, 1e-05
  %v1548 = vadd.f32 %v1544, 1e-05
  %v1549 = vadd.f32 %v1545, 1e-05
  %v1550 = vadd.f32 %v1546, 1e-05
  %v1551 = vrsqrt.pop %v1547
  %v1552 = vrsqrt.pop %v1548
  %v1553 = vrsqrt.pop %v1549
  %v1554 = vrsqrt.pop %v1550
  %v1555 = vmul.f32 %v1523, %v1551
  %v1556 = vmul.f32 %v1524, %v1552
  %v1557 = vmul.f32 %v1525, %v1553
  %v1558 = vmul.f32 %v1526, %v1554
  %v1560 = vlaneseq
  %v1561 = vshrl.u32 %v1560, 7
  %v1562 = vsub.s32 0, %v1561
  %v1563 = vrot.slane %v1505, %v1562
  %v1565 = vmul.f32 %v1555, %v1563
  %v1566 = vmul.f32 %v1556, %v1563
  %v1567 = vmul.f32 %v1557, %v1563
  %v1568 = vmul.f32 %v1558, %v1563
  %v1570 = vlaneseq
  %v1571 = vshrl.u32 %v1570, 7
  %v1572 = vsub.s32 0, %v1571
  %v1573 = vrot.slane %v1506, %v1572
  %v1575 = vadd.f32 %v1565, %v1573
  %v1576 = vadd.f32 %v1566, %v1573
  %v1577 = vadd.f32 %v1567, %v1573
  %v1578 = vadd.f32 %v1568, %v1573
  %v1579 = vpack.c.bf16 %v1576, %v1575
  %v1580 = vpack.c.bf16 %v1578, %v1577
  %v1581 = vld [vmem:[%s10] sm:$0xf]
  %v1582 = vld [vmem:[%s10 + $0x4] sm:$0xf]
  %v1583 = vld [vmem:[%s10 + $0x8] sm:$0xf]
  %v1584 = vld [vmem:[%s10 + $0xc] sm:$0xf]
  %v1585 = vld [vmem:[%s11] sm:$0x1]
  %v1587 = vlaneseq
  %v1588 = vshrl.u32 %v1587, 7
  %v1589 = vsub.s32 0, %v1588
  %v1590 = vrot.slane %v1585, %v1589
  %v1596 = vunpack.c.l.b16 %v1581
  %v1597 = vunpack.c.l.b16 %v1582
  %v1598 = vunpack.c.l.b16 %v1583
  %v1599 = vunpack.c.l.b16 %v1584
  %v1600 = vpack.c.b16 %v1597, %v1596
  %v1601 = vpack.c.b16 %v1599, %v1598
  %v1605 = vsel %vm66, %v1579, 0
  %v1608 = vsel %vm66, %v1580, 0
  %1610 = vmatprep.subr.bf16.mxu0 0
  %1611 = vmatpush1.bf16.msra.mxu0 %v1600
  %1612 = vmatprep.subr.bf16.mxu0 0
  %1613 = vmatpush1.bf16.msra.mxu0 %v1601
  %1614 = vmatprep.subr.bf16.mxu0 0
  %1615 = vmatpush1.bf16.msra.mxu0 0
  %1616 = vmatprep.subr.bf16.mxu0 0
  %1617 = vmatpush1.bf16.msra.mxu0 0
  %1618 = vmatprep.subr.bf16.mxu0 0
  %1619 = vmatpush1.bf16.msra.mxu0 0
  %1620 = vmatprep.subr.bf16.mxu0 0
  %1621 = vmatpush1.bf16.msra.mxu0 0
  %1622 = vmatprep.subr.bf16.mxu0 0
  %1623 = vmatpush1.bf16.msra.mxu0 0
  %1624 = vmatprep.subr.bf16.mxu0 0
  %1625 = vmatpush1.bf16.msra.mxu0 0
  %1626 = vmatprep.subr.bf16.mxu0 0
  %1627 = vmatpush1.bf16.msra.mxu0 0
  %1628 = vmatprep.subr.bf16.mxu0 0
  %1629 = vmatpush1.bf16.msra.mxu0 0
  %1630 = vmatprep.subr.bf16.mxu0 0
  %1631 = vmatpush1.bf16.msra.mxu0 0
  %1632 = vmatprep.subr.bf16.mxu0 0
  %1633 = vmatpush1.bf16.msra.mxu0 0
  %1634 = vmatprep.subr.bf16.mxu0 0
  %1635 = vmatpush1.bf16.msra.mxu0 0
  %1636 = vmatprep.subr.bf16.mxu0 0
  %1637 = vmatpush1.bf16.msra.mxu0 0
  %1638 = vmatprep.subr.bf16.mxu0 0
  %1639 = vmatpush1.bf16.msra.mxu0 0
  %1640 = vmatprep.subr.bf16.mxu0 0
  %1641 = vmatpush1.bf16.msra.mxu0 0
  %1642 = vmatprep.mubr.bf16.mxu0 0
  %1643 = vmatmul.mubr.bf16.gmra.mrb[0].mxu0 %v1605
  %v1644 = vpop.f32.mrb[0].mxu0
  %v1645 = vadd.f32 %v1590, %v1644
  %v1646 = vpop.f32.mrb[0].mxu0
  %v1647 = vpop.f32.mrb[0].mxu0
  %v1648 = vadd.f32 %v1590, %v1647
  %v1649 = vpop.f32.mrb[0].mxu0
  %1650 = vmatprep.mubr.bf16.mxu0 0
  %1651 = vmatmul.mubr.bf16.gmra.mrb[0].mxu0 %v1608
  %v1652 = vpop.f32.mrb[0].mxu0
  %v1653 = vadd.f32 %v1590, %v1652
  %v1654 = vpop.f32.mrb[0].mxu0
  %v1655 = vpop.f32.mrb[0].mxu0
  %v1656 = vadd.f32 %v1590, %v1655
  %v1657 = vpop.f32.mrb[0].mxu0
  %1658 = vdwg.mxu0
  %v1659 = vmul.f32 %v1645, %v1645
  %v1660 = vmul.f32 %v1648, %v1648
  %v1661 = vmul.f32 %v1653, %v1653
  %v1662 = vmul.f32 %v1656, %v1656
  %v1663 = vmul.f32 %v1645, %v1659
  %v1664 = vmul.f32 %v1648, %v1660
  %v1665 = vmul.f32 %v1653, %v1661
  %v1666 = vmul.f32 %v1656, %v1662
  %v1667 = vmul.f32 %v1663, 0.044715
  %v1668 = vmul.f32 %v1664, 0.044715
  %v1669 = vmul.f32 %v1665, 0.044715
  %v1670 = vmul.f32 %v1666, 0.044715
  %v1671 = vadd.f32 %v1645, %v1667
  %v1672 = vadd.f32 %v1648, %v1668
  %v1673 = vadd.f32 %v1653, %v1669
  %v1674 = vadd.f32 %v1656, %v1670
  %v1675 = vmul.f32 %v1671, 0.7978846
  %v1676 = vmul.f32 %v1672, 0.7978846
  %v1677 = vmul.f32 %v1673, 0.7978846
  %v1678 = vmul.f32 %v1674, 0.7978846
  %v1679 = vtanh.pop %v1675
  %v1680 = vtanh.pop %v1676
  %v1681 = vtanh.pop %v1677
  %v1682 = vtanh.pop %v1678
  %v1683 = vadd.f32 %v1679, 1.0
  %v1684 = vadd.f32 %v1680, 1.0
  %v1685 = vadd.f32 %v1681, 1.0
  %v1686 = vadd.f32 %v1682, 1.0
  %v1687 = vmul.f32 %v1683, 0.5
  %v1688 = vmul.f32 %v1684, 0.5
  %v1689 = vmul.f32 %v1685, 0.5
  %v1690 = vmul.f32 %v1686, 0.5
  %v1691 = vmul.f32 %v1645, %v1687
  %v1692 = vmul.f32 %v1648, %v1688
  %v1693 = vmul.f32 %v1653, %v1689
  %v1694 = vmul.f32 %v1656, %v1690
  %v1695 = vpack.c.bf16 %v1692, %v1691
  %v1696 = vpack.c.bf16 %v1694, %v1693
  %v1697 = vld [vmem:[%s12] sm:$0xf]
  %v1698 = vld [vmem:[%s12 + $0x4] sm:$0xf]
  %v1699 = vld [vmem:[%s12 + $0x8] sm:$0xf]
  %v1700 = vld [vmem:[%s12 + $0xc] sm:$0xf]
  %v1701 = vld [vmem:[%s12 + $0x10] sm:$0xf]
  %v1702 = vld [vmem:[%s12 + $0x14] sm:$0xf]
  %v1703 = vld [vmem:[%s12 + $0x18] sm:$0xf]
  %v1704 = vld [vmem:[%s12 + $0x1c] sm:$0xf]
  %v1705 = vld [vmem:[%s13] sm:$0x1]
  %v1707 = vlaneseq
  %v1708 = vshrl.u32 %v1707, 7
  %v1709 = vsub.s32 0, %v1708
  %v1710 = vrot.slane %v1705, %v1709
  %v1720 = vunpack.c.l.b16 %v1697
  %v1721 = vunpack.c.l.b16 %v1698
  %v1722 = vunpack.c.l.b16 %v1699
  %v1723 = vunpack.c.l.b16 %v1700
  %v1724 = vunpack.c.l.b16 %v1701
  %v1725 = vunpack.c.l.b16 %v1702
  %v1726 = vunpack.c.l.b16 %v1703
  %v1727 = vunpack.c.l.b16 %v1704
  %v1728 = vpack.c.b16 %v1721, %v1720
  %v1729 = vpack.c.b16 %v1723, %v1722
  %v1730 = vpack.c.b16 %v1725, %v1724
  %v1731 = vpack.c.b16 %v1727, %v1726
  %vm1736 = vcmask 523264
  %v1738 = vsel %vm1736, %v1695, 0
  %v1741 = vsel %vm1736, %v1696, 0
  %1743 = vmatprep.subr.bf16.mxu0 0
  %1744 = vmatpush1.bf16.msra.mxu0 %v1728
  %1745 = vmatprep.subr.bf16.mxu0 0
  %1746 = vmatpush1.bf16.msra.mxu0 %v1729
  %1747 = vmatprep.subr.bf16.mxu0 0
  %1748 = vmatpush1.bf16.msra.mxu0 %v1730
  %1749 = vmatprep.subr.bf16.mxu0 0
  %1750 = vmatpush1.bf16.msra.mxu0 %v1731
  %1751 = vmatprep.subr.bf16.mxu0 0
  %1752 = vmatpush1.bf16.msra.mxu0 0
  %1753 = vmatprep.subr.bf16.mxu0 0
  %1754 = vmatpush1.bf16.msra.mxu0 0
  %1755 = vmatprep.subr.bf16.mxu0 0
  %1756 = vmatpush1.bf16.msra.mxu0 0
  %1757 = vmatprep.subr.bf16.mxu0 0
  %1758 = vmatpush1.bf16.msra.mxu0 0
  %1759 = vmatprep.subr.bf16.mxu0 0
  %1760 = vmatpush1.bf16.msra.mxu0 0
  %1761 = vmatprep.subr.bf16.mxu0 0
  %1762 = vmatpush1.bf16.msra.mxu0 0
  %1763 = vmatprep.subr.bf16.mxu0 0
  %1764 = vmatpush1.bf16.msra.mxu0 0
  %1765 = vmatprep.subr.bf16.mxu0 0
  %1766 = vmatpush1.bf16.msra.mxu0 0
  %1767 = vmatprep.subr.bf16.mxu0 0
  %1768 = vmatpush1.bf16.msra.mxu0 0
  %1769 = vmatprep.subr.bf16.mxu0 0
  %1770 = vmatpush1.bf16.msra.mxu0 0
  %1771 = vmatprep.subr.bf16.mxu0 0
  %1772 = vmatpush1.bf16.msra.mxu0 0
  %1773 = vmatprep.subr.bf16.mxu0 0
  %1774 = vmatpush1.bf16.msra.mxu0 0
  %1775 = vmatprep.mubr.bf16.mxu0 0
  %1776 = vmatmul.mubr.bf16.gmra.mrb[0].mxu0 %v1738
  %v1777 = vpop.f32.mrb[0].mxu0
  %v1778 = vadd.f32 %v1710, %v1777
  %v1779 = vpop.f32.mrb[0].mxu0
  %v1780 = vpop.f32.mrb[0].mxu0
  %v1781 = vadd.f32 %v1710, %v1780
  %v1782 = vpop.f32.mrb[0].mxu0
  %1783 = vmatprep.mubr.bf16.mxu0 0
  %1784 = vmatmul.mubr.bf16.gmra.mrb[0].mxu0 %v1741
  %v1785 = vpop.f32.mrb[0].mxu0
  %v1786 = vadd.f32 %v1710, %v1785
  %v1787 = vpop.f32.mrb[0].mxu0
  %v1788 = vpop.f32.mrb[0].mxu0
  %v1789 = vadd.f32 %v1710, %v1788
  %v1790 = vpop.f32.mrb[0].mxu0
  %1791 = vdwg.mxu0
  %v1792 = vadd.f32 %v1501, %v1778
  %v1793 = vadd.f32 %v1502, %v1781
  %v1794 = vadd.f32 %v1503, %v1786
  %v1795 = vadd.f32 %v1504, %v1789
  %v1796 = vpack.c.bf16 %v1793, %v1792
  %v1797 = vpack.c.bf16 %v1795, %v1794
  %v1798 = vld [vmem:[%s14] sm:$0xff]
  %v1799 = vld [vmem:[%s14 + $0x8] sm:$0xff]
  %v1800 = vld [vmem:[%s14 + $0x10] sm:$0xff]
  %v1801 = vld [vmem:[%s14 + $0x18] sm:$0xff]
  %v1802 = vld [vmem:[%s15] sm:$0x3]
  %v1804 = vlaneseq
  %v1805 = vshrl.u32 %v1804, 7
  %v1806 = vsub.s32 0, %v1805
  %v1807 = vrot.slane %v1802, %v1806
  %v1808 = vlaneseq
  %v1809 = vshrl.u32 %v1808, 7
  %v1810 = vsub.s32 1, %v1809
  %v1811 = vrot.slane %v1802, %v1810
  %v1818 = vunpack.c.l.b16 %v1798
  %v1819 = vunpack.c.h.b16 %v1798
  %v1820 = vunpack.c.l.b16 %v1799
  %v1821 = vunpack.c.h.b16 %v1799
  %v1822 = vunpack.c.l.b16 %v1800
  %v1823 = vunpack.c.h.b16 %v1800
  %v1824 = vunpack.c.l.b16 %v1801
  %v1825 = vunpack.c.h.b16 %v1801
  %v1826 = vpack.c.b16 %v1820, %v1818
  %v1827 = vpack.c.b16 %v1821, %v1819
  %v1828 = vpack.c.b16 %v1824, %v1822
  %v1829 = vpack.c.b16 %v1825, %v1823
  %v1835 = vsel %vm66, %v1796, 0
  %v1838 = vsel %vm66, %v1797, 0
  %1840 = vmatprep.subr.bf16.mxu0 %v1827
  %1841 = vmatpush1.bf16.msra.mxu0 %v1826
  %1842 = vmatprep.subr.bf16.mxu0 %v1829
  %1843 = vmatpush1.bf16.msra.mxu0 %v1828
  %1844 = vmatprep.subr.bf16.mxu0 0
  %1845 = vmatpush1.bf16.msra.mxu0 0
  %1846 = vmatprep.subr.bf16.mxu0 0
  %1847 = vmatpush1.bf16.msra.mxu0 0
  %1848 = vmatprep.subr.bf16.mxu0 0
  %1849 = vmatpush1.bf16.msra.mxu0 0
  %1850 = vmatprep.subr.bf16.mxu0 0
  %1851 = vmatpush1.bf16.msra.mxu0 0
  %1852 = vmatprep.subr.bf16.mxu0 0
  %1853 = vmatpush1.bf16.msra.mxu0 0
  %1854 = vmatprep.subr.bf16.mxu0 0
  %1855 = vmatpush1.bf16.msra.mxu0 0
  %1856 = vmatprep.subr.bf16.mxu0 0
  %1857 = vmatpush1.bf16.msra.mxu0 0
  %1858 = vmatprep.subr.bf16.mxu0 0
  %1859 = vmatpush1.bf16.msra.mxu0 0
  %1860 = vmatprep.subr.bf16.mxu0 0
  %1861 = vmatpush1.bf16.msra.mxu0 0
  %1862 = vmatprep.subr.bf16.mxu0 0
  %1863 = vmatpush1.bf16.msra.mxu0 0
  %1864 = vmatprep.subr.bf16.mxu0 0
  %1865 = vmatpush1.bf16.msra.mxu0 0
  %1866 = vmatprep.subr.bf16.mxu0 0
  %1867 = vmatpush1.bf16.msra.mxu0 0
  %1868 = vmatprep.subr.bf16.mxu0 0
  %1869 = vmatpush1.bf16.msra.mxu0 0
  %1870 = vmatprep.subr.bf16.mxu0 0
  %1871 = vmatpush1.bf16.msra.mxu0 0
  %1872 = vmatprep.mubr.bf16.mxu0 0
  %1873 = vmatmul.mubr.bf16.gmra.mrb[0].mxu0 %v1835
  %v1874 = vpop.f32.mrb[0].mxu0
  %v1875 = vadd.f32 %v1807, %v1874
  %v1876 = vpop.f32.mrb[0].mxu0
  %v1877 = vadd.f32 %v1811, %v1876
  %v1878 = vpop.f32.mrb[0].mxu0
  %v1879 = vadd.f32 %v1807, %v1878
  %v1880 = vpop.f32.mrb[0].mxu0
  %v1881 = vadd.f32 %v1811, %v1880
  %1882 = vmatprep.mubr.bf16.mxu0 0
  %1883 = vmatmul.mubr.bf16.gmra.mrb[0].mxu0 %v1838
  %v1884 = vpop.f32.mrb[0].mxu0
  %v1885 = vadd.f32 %v1807, %v1884
  %v1886 = vpop.f32.mrb[0].mxu0
  %v1887 = vadd.f32 %v1811, %v1886
  %v1888 = vpop.f32.mrb[0].mxu0
  %v1889 = vadd.f32 %v1807, %v1888
  %v1890 = vpop.f32.mrb[0].mxu0
  %v1891 = vadd.f32 %v1811, %v1890
  %1892 = vdwg.mxu0
  %v1893 = vmax.f32 %v1875, %v1877
  %1894 = vmax.xlane.f32.xlu0 %v1893
  %v1895 = vpop.xlane.xlu0 %1894
  %v1896 = vmax.f32 %v1879, %v1881
  %1897 = vmax.xlane.f32.xlu0 %v1896
  %v1898 = vpop.xlane.xlu0 %1897
  %v1899 = vmax.f32 %v1885, %v1887
  %1900 = vmax.xlane.f32.xlu0 %v1899
  %v1901 = vpop.xlane.xlu0 %1900
  %v1902 = vmax.f32 %v1889, %v1891
  %1903 = vmax.xlane.f32.xlu0 %v1902
  %v1904 = vpop.xlane.xlu0 %1903
  %v1905 = vsub.f32 %v1875, %v1895
  %v1906 = vsub.f32 %v1877, %v1895
  %v1907 = vsub.f32 %v1879, %v1898
  %v1908 = vsub.f32 %v1881, %v1898
  %v1909 = vsub.f32 %v1885, %v1901
  %v1910 = vsub.f32 %v1887, %v1901
  %v1911 = vsub.f32 %v1889, %v1904
  %v1912 = vsub.f32 %v1891, %v1904
  %v1913 = vmul.f32 %v1905, 1.442695
  %v1914 = vpow.pop %v1913
  %v1915 = vmul.f32 %v1906, 1.442695
  %v1916 = vpow.pop %v1915
  %v1917 = vmul.f32 %v1907, 1.442695
  %v1918 = vpow.pop %v1917
  %v1919 = vmul.f32 %v1908, 1.442695
  %v1920 = vpow.pop %v1919
  %v1921 = vmul.f32 %v1909, 1.442695
  %v1922 = vpow.pop %v1921
  %v1923 = vmul.f32 %v1910, 1.442695
  %v1924 = vpow.pop %v1923
  %v1925 = vmul.f32 %v1911, 1.442695
  %v1926 = vpow.pop %v1925
  %v1927 = vmul.f32 %v1912, 1.442695
  %v1928 = vpow.pop %v1927
  %v1929 = vadd.f32 %v1914, %v1916
  %1930 = vadd.xlane.f32.xlu0 %v1929
  %v1931 = vpop.xlane.xlu0 %1930
  %v1932 = vadd.f32 %v1918, %v1920
  %1933 = vadd.xlane.f32.xlu0 %v1932
  %v1934 = vpop.xlane.xlu0 %1933
  %v1935 = vadd.f32 %v1922, %v1924
  %1936 = vadd.xlane.f32.xlu0 %v1935
  %v1937 = vpop.xlane.xlu0 %1936
  %v1938 = vadd.f32 %v1926, %v1928
  %1939 = vadd.xlane.f32.xlu0 %v1938
  %v1940 = vpop.xlane.xlu0 %1939
  %v1941 = vmul.f32 %v1914, %v1905
  %v1942 = vmul.f32 %v1916, %v1906
  %v1943 = vmul.f32 %v1918, %v1907
  %v1944 = vmul.f32 %v1920, %v1908
  %v1945 = vmul.f32 %v1922, %v1909
  %v1946 = vmul.f32 %v1924, %v1910
  %v1947 = vmul.f32 %v1926, %v1911
  %v1948 = vmul.f32 %v1928, %v1912
  %v1949 = vadd.f32 %v1941, %v1942
  %1950 = vadd.xlane.f32.xlu0 %v1949
  %v1951 = vpop.xlane.xlu0 %1950
  %v1952 = vadd.f32 %v1943, %v1944
  %1953 = vadd.xlane.f32.xlu0 %v1952
  %v1954 = vpop.xlane.xlu0 %1953
  %v1955 = vadd.f32 %v1945, %v1946
  %1956 = vadd.xlane.f32.xlu0 %v1955
  %v1957 = vpop.xlane.xlu0 %1956
  %v1958 = vadd.f32 %v1947, %v1948
  %1959 = vadd.xlane.f32.xlu0 %v1958
  %v1960 = vpop.xlane.xlu0 %1959
  %v1961 = vlog2.pop %v1931
  %v1962 = vmul.f32 %v1961, 0.6931472
  %v1963 = vlog2.pop %v1934
  %v1964 = vmul.f32 %v1963, 0.6931472
  %v1965 = vlog2.pop %v1937
  %v1966 = vmul.f32 %v1965, 0.6931472
  %v1967 = vlog2.pop %v1940
  %v1968 = vmul.f32 %v1967, 0.6931472
  %v1969 = vrcp.pop %v1931
  %v1970 = vmul.f32 %v1951, %v1969
  %v1971 = vrcp.pop %v1934
  %v1972 = vmul.f32 %v1954, %v1971
  %v1973 = vrcp.pop %v1937
  %v1974 = vmul.f32 %v1957, %v1973
  %v1975 = vrcp.pop %v1940
  %v1976 = vmul.f32 %v1960, %v1975
  %v1977 = vsub.f32 %v1962, %v1970
  %v1978 = vsub.f32 %v1964, %v1972
  %v1979 = vsub.f32 %v1966, %v1974
  %v1980 = vsub.f32 %v1968, %v1976
  %vm1981 = vcmask 7168
  %1982 = vst.msk [vmem:[%s16] sm:$0xff] %vm1981, %v1977
  %1983 = vst.msk [vmem:[%s16 + $0x8] sm:$0xff] %vm1981, %v1978
  %1984 = vst.msk [vmem:[%s16 + $0x10] sm:$0xff] %vm1981, %v1979
  %1985 = vst.msk [vmem:[%s16 + $0x18] sm:$0xff] %vm1981, %v1980
  // Predicated region
  $region66: #{byte_lm_entropy.1} parent=0 // pred_check
    _
  $region67: #{byte_lm_entropy.1} parent=0 // pred_check_branch
    %1987 = sbr.rel (0) target = $region69
  $region68: #{byte_lm_entropy.1} parent=0 // pred_region
    _
  $region69: #{byte_lm_entropy.1} parent=0 // pred_fallthru
    _
  // Predicated region
  $region70: #{byte_lm_entropy.1} parent=0 // pred_check
    _
  $region71: #{byte_lm_entropy.1} parent=0 // pred_check_branch
    %1989 = sbr.rel (0) target = $region73
  $region72: #{byte_lm_entropy.1} parent=0 // pred_region
    _
  $region73: #{byte_lm_entropy.1} parent=0 // pred_fallthru
    _

</llo_original>
